<compile_context>
chip_gen: v7x
topology: tpu7x:2x2x1
jax: 0.10.0
libtpu: 0.0.40
codegen_flags: <defaults>
</compile_context>

<pallas_src>
import functools
import math

import jax
import jax.numpy as jnp
from jax.experimental import pallas as pl
from jax.experimental.pallas import tpu as pltpu


# ------------------------------ fused kernel --------------------------------

def _gcn_fused_kernel(a_ref, x_ref, w1_ref, b1_ref, w2_ref, b2_ref,
                      head_ref, tail_ref, rel_ref, inrel_ref, relold_ref,
                      l1a_ref, l1b_ref, l1bias_ref, l2w_ref, l2b_ref,
                      l5w_ref, l5b_ref,
                      time_ref, l3w_ref, l3b_ref, l4w_ref, l4b_ref,
                      feats_out_ref, rel_out_ref, time_out_ref,
                      feats_sc):
    f32 = jnp.float32
    bf16 = jnp.bfloat16

    def l2norm(x):
        # F.normalize(x, dim=1, p=2); rsqrt lands on the EUP slot, kept f32 (v5e).
        ss = jnp.sum(x * x, axis=1, keepdims=True)
        return x * jax.lax.rsqrt(jnp.maximum(ss, 1e-24))

    # ---- node path: conv1 + ReLU -> (dropout: eval-mode identity) -> conv2 ----
    # TODO(synk): F.dropout(training=self.training) is stochastic; identity here.
    a = a_ref[...]                                                        # bf16 [N, N]
    xw = jnp.dot(x_ref[...], w1_ref[...], preferred_element_type=f32)
    h = jnp.maximum(
        jnp.dot(a, xw.astype(bf16), preferred_element_type=f32) + b1_ref[...], 0.0)
    hw = jnp.dot(h.astype(bf16), w2_ref[...], preferred_element_type=f32)
    feats = jnp.dot(a, hw.astype(bf16), preferred_element_type=f32) + b2_ref[...]
    feats_sc[...] = feats                                                 # f32 [N, CP]

    # ---- relation head: direct row gathers + per-relation mean (no one-hot MXU) --
    r = rel_out_ref.shape[0]
    cp = feats_out_ref.shape[1]
    te = head_ref.shape[0]
    iota_r = jax.lax.broadcasted_iota(jnp.int32, (r, 1), 0)               # hoisted

    def edge_body(e, carry):
        hacc, tacc, cnt = carry
        hid = head_ref[e]                      # scalar loads from SMEM
        tid = tail_ref[e]
        rid = rel_ref[e]
        hrow = feats_sc[pl.ds(hid, 1), :]      # (1, CP) row gather from VMEM
        trow = feats_sc[pl.ds(tid, 1), :]
        sel = (iota_r == rid).astype(f32)      # (R, 1) relation selector
        return (hacc + sel * hrow, tacc + sel * trow, cnt + sel)

    zero_rc = jnp.zeros((r, cp), f32)
    hacc, tacc, cnt = jax.lax.fori_loop(
        0, te, edge_body, (zero_rc, zero_rc, jnp.zeros((r, 1), f32)), unroll=True)

    # Exact divide (parity with torch.mean).  A relation with zero matching edges
    # yields 0 * inf = nan, matching torch's mean-of-empty; rows not listed in
    # `relations` are protected by the jnp.where below.
    inv = 1.0 / cnt
    mh = hacc * inv
    mt = tacc * inv
    # cat([mh, mt]) @ W1 == mh @ W1a + mt @ W1b  (concat folded into split weights).
    h1 = (jnp.dot(mh.astype(bf16), l1a_ref[...], preferred_element_type=f32)
          + jnp.dot(mt.astype(bf16), l1b_ref[...], preferred_element_type=f32)
          + l1bias_ref[...])
    computed = (jnp.dot(h1.astype(bf16), l2w_ref[...], preferred_element_type=f32)
                + l2b_ref[...])
    # Only rows listed in `relations` are updated; others keep the old embedding.
    rel_emb = jnp.where(inrel_ref[...] != 0, computed, relold_ref[...])
    rel_new = (jnp.dot(rel_emb.astype(bf16), l5w_ref[...], preferred_element_type=f32)
               + l5b_ref[...])

    # ---- time path: mlp_l3 -> mlp_l4 ----
    t1 = jnp.dot(time_ref[...], l3w_ref[...], preferred_element_type=f32) + l3b_ref[...]
    t2 = (jnp.dot(t1.astype(bf16), l4w_ref[...], preferred_element_type=f32)
          + l4b_ref[...])

    # ---- fused L2-normalize epilogues (lane-dense 128-wide stores) ----
    feats_out_ref[...] = l2norm(feats)
    rel_out_ref[...] = l2norm(rel_new)
    time_out_ref[...] = l2norm(t2)


# ------------------------------- glue (JAX) ---------------------------------

def normalized_adjacency(edges, num_nodes):
    # TODO(synk): at real graph scale build the aggregation from edge lists
    # (segment-sum / CSR offsets) instead of a dense [N, N] scatter-add.
    src, dst = edges[0], edges[1]
    a = jnp.zeros((num_nodes, num_nodes), jnp.float32)
    a = a.at[dst, src].add(1.0)                        # message src -> dst
    a = a + jnp.eye(num_nodes, dtype=jnp.float32)      # GCNConv adds self loops
    deg = jnp.sum(a, axis=1)
    dinv = 1.0 / jnp.sqrt(deg)
    dinv = jnp.where(jnp.isinf(dinv), 0.0, dinv)
    return a * dinv[:, None] * dinv[None, :]


def _rup(n, m=128):
    return ((n + m - 1) // m) * m


def _pad2(x, rows, cols, dtype=jnp.float32):
    x = x.astype(jnp.float32)
    return jnp.pad(x, ((0, rows - x.shape[0]), (0, cols - x.shape[1]))).astype(dtype)


def _padb(b, cols):
    b = b.reshape(1, -1).astype(jnp.float32)
    return jnp.pad(b, ((0, 0), (0, cols - b.shape[1])))


def prepare_gcn_params(params):
    """Pad + cast every weight ONCE (hoisted out of the per-call path)."""
    feat_in, hidden = params["conv1_w"].shape
    classes = params["conv2_w"].shape[1]
    rel_dim = params["l2_w"].shape[1]
    t_dim = params["l3_w"].shape[1]
    fp, hp, cp = _rup(feat_in), _rup(hidden), _rup(classes)
    mp, tp = _rup(rel_dim), _rup(t_dim)
    bf16 = jnp.bfloat16
    prepared = {
        "w1": _pad2(params["conv1_w"], fp, hp, bf16), "b1": _padb(params["conv1_b"], hp),
        "w2": _pad2(params["conv2_w"], hp, cp, bf16), "b2": _padb(params["conv2_b"], cp),
        "l1a": _pad2(params["l1_w"][:classes], cp, mp, bf16),
        "l1b": _pad2(params["l1_w"][classes:], cp, mp, bf16),
        "l1bias": _padb(params["l1_b"], mp),
        "l2w": _pad2(params["l2_w"], mp, mp, bf16), "l2b": _padb(params["l2_b"], mp),
        "l5w": _pad2(params["l5_w"], mp, mp, bf16), "l5b": _padb(params["l5_b"], mp),
        "l3w": _pad2(params["l3_w"], tp, tp, bf16), "l3b": _padb(params["l3_b"], tp),
        "l4w": _pad2(params["l4_w"], tp, tp, bf16), "l4b": _padb(params["l4_b"], tp),
    }
    dims = (feat_in, hidden, classes, rel_dim, t_dim, fp, hp, cp, mp, tp)
    return prepared, dims


def gcn_forward(prepared, features, edges, edge_triple, relations,
                relation_embedding, time_embedding, *, dims):
    (feat_in, hidden, classes, rel_dim, t_dim, fp, hp, cp, mp, tp) = dims
    n = features.shape[0]
    r_total = relation_embedding.shape[0]
    t_rows = time_embedding.shape[0]

    a_hat = normalized_adjacency(edges, n).astype(jnp.bfloat16)

    # Per-call data: lane-dense padding, MXU inputs in bf16, ids as int32.
    x_p = _pad2(features, n, fp, jnp.bfloat16)
    rel_old = _pad2(relation_embedding, r_total, mp)              # f32, aliased to out
    time_p = _pad2(time_embedding, t_rows, tp, jnp.bfloat16)

    head = edge_triple[:, 0].astype(jnp.int32)
    tail = edge_triple[:, 2].astype(jnp.int32)
    rel = edge_triple[:, 1].astype(jnp.int32)
    in_rel = (jnp.zeros((r_total,), jnp.int32).at[relations].set(1)
              .reshape(r_total, 1))

    p = prepared
    args = (a_hat, x_p, p["w1"], p["b1"], p["w2"], p["b2"],
            head, tail, rel, in_rel, rel_old,
            p["l1a"], p["l1b"], p["l1bias"], p["l2w"], p["l2b"],
            p["l5w"], p["l5b"],
            time_p, p["l3w"], p["l3b"], p["l4w"], p["l4b"])

    vmem = lambda: pl.BlockSpec(memory_space=pltpu.MemorySpace.VMEM)
    smem = lambda: pl.BlockSpec(memory_space=pltpu.MemorySpace.SMEM)
    smem_idx = {6, 7, 8}                       # head, tail, rel ids live in SMEM
    in_specs = [smem() if i in smem_idx else vmem() for i in range(len(args))]

    out_shape = (jax.ShapeDtypeStruct((n, cp), jnp.float32),
                 jax.ShapeDtypeStruct((r_total, mp), jnp.float32),
                 jax.ShapeDtypeStruct((t_rows, tp), jnp.float32))

    in_bytes = sum(int(a.size) * a.dtype.itemsize for a in args)
    out_bytes = sum(math.prod(o.shape) * o.dtype.itemsize for o in out_shape)
    scratch_bytes = n * cp * 4
    vmem_limit = min(max(4 * (in_bytes + out_bytes + scratch_bytes) + (16 << 20),
                         32 << 20),
                     64 << 20)
    flops = 2 * (n * fp * hp + n * n * hp + n * hp * cp + n * n * cp
                 + 2 * r_total * cp * mp + 2 * r_total * mp * mp
                 + 2 * t_rows * tp * tp)
    cost = pl.CostEstimate(flops=int(flops),
                           transcendentals=int(n + 2 * r_total + t_rows),
                           bytes_accessed=int(in_bytes + out_bytes))

    feats_p, rel_p, time_out_p = pl.pallas_call(
        _gcn_fused_kernel,
        out_shape=out_shape,
        in_specs=in_specs,
        out_specs=(vmem(), vmem(), vmem()),
        scratch_shapes=[pltpu.VMEM((n, cp), jnp.float32)],
        input_output_aliases={10: 1},           # rel_old buffer reused for rel_out
        compiler_params=pltpu.CompilerParams(vmem_limit_bytes=int(vmem_limit)),
        cost_estimate=cost,
    )(*args)

    # Slice padded lanes back to logical widths (cheap XLA slice, outside kernel).
    return (feats_p[:, :classes],
            rel_p[:, :rel_dim],
            time_out_p[:, :t_dim])


def _linear_params(key, fan_in, fan_out):
    kw, kb = jax.random.split(key)
    bound = 1.0 / (float(fan_in) ** 0.5)
    w = jax.random.uniform(kw, (fan_in, fan_out), jnp.float32, -bound, bound)
    b = jax.random.uniform(kb, (fan_out,), jnp.float32, -bound, bound)
    return w, b


# ---------------------------------- main ------------------------------------

if __name__ == "__main__":
    key = jax.random.PRNGKey(0)
    # classes = 80 is forced by mlp_l1 having in_features = 160 = 2 * classes.
    feature, hidden, classes = 16, 32, 80
    N, E, T_EDGES, R, T_TIME = 12, 24, 20, 5, 6

    keys = jax.random.split(key, 16)
    params = {}
    params["conv1_w"], params["conv1_b"] = _linear_params(keys[0], feature, hidden)
    params["conv2_w"], params["conv2_b"] = _linear_params(keys[1], hidden, classes)
    params["l1_w"], params["l1_b"] = _linear_params(keys[2], 2 * classes, 100)
    params["l2_w"], params["l2_b"] = _linear_params(keys[3], 100, 100)
    params["l3_w"], params["l3_b"] = _linear_params(keys[4], 20, 20)
    params["l4_w"], params["l4_b"] = _linear_params(keys[5], 20, 20)
    params["l5_w"], params["l5_b"] = _linear_params(keys[6], 100, 100)

    features = jax.random.normal(keys[7], (N, feature), jnp.float32)

    src = jax.random.randint(keys[8], (E,), 0, N)
    dst = jax.random.randint(keys[9], (E,), 0, N)
    dst = jnp.where(dst == src, (dst + 1) % N, dst)    # no explicit self loops
    edges = jnp.stack([src, dst])                      # [2, E]

    head = jax.random.randint(keys[10], (T_EDGES,), 0, N)
    tail = jax.random.randint(keys[11], (T_EDGES,), 0, N)
    rel = jax.random.randint(keys[12], (T_EDGES,), 0, R)
    rel = rel.at[:R].set(jnp.arange(R))                # every relation has >= 1 edge
    edge_triple = jnp.stack([head, rel, tail], axis=1)  # [T_EDGES, 3]

    relations = jnp.arange(R)
    relation_embedding = jax.random.normal(keys[13], (R, 100), jnp.float32)
    time_embedding = jax.random.normal(keys[14], (T_TIME, 20), jnp.float32)

    # Padding/casting of all weights happens once, outside the per-call path.
    prepared, dims = prepare_gcn_params(params)
    fwd = jax.jit(functools.partial(gcn_forward, dims=dims))

    out = fwd(prepared, features, edges, edge_triple, relations,
              relation_embedding, time_embedding)
    out = jax.block_until_ready(out)
    assert out[0].shape == (N, classes)
    assert out[1].shape == (R, 100)
    assert out[2].shape == (T_TIME, 20)
    print("KERNEL_OK")
</pallas_src>

<mosaic_0001>
module attributes {stable_mosaic.version = 11 : i64} {
  func.func @_gcn_fused_kernel(%arg0: memref<12x12xbf16, #tpu.memory_space<vmem>>, %arg1: memref<12x128xbf16, #tpu.memory_space<vmem>>, %arg2: memref<128x128xbf16, #tpu.memory_space<vmem>>, %arg3: memref<1x128xf32, #tpu.memory_space<vmem>>, %arg4: memref<128x128xbf16, #tpu.memory_space<vmem>>, %arg5: memref<1x128xf32, #tpu.memory_space<vmem>>, %arg6: memref<20xi32, #tpu.memory_space<smem>>, %arg7: memref<20xi32, #tpu.memory_space<smem>>, %arg8: memref<20xi32, #tpu.memory_space<smem>>, %arg9: memref<5x1xi32, #tpu.memory_space<vmem>>, %arg10: memref<5x128xf32, #tpu.memory_space<vmem>>, %arg11: memref<128x128xbf16, #tpu.memory_space<vmem>>, %arg12: memref<128x128xbf16, #tpu.memory_space<vmem>>, %arg13: memref<1x128xf32, #tpu.memory_space<vmem>>, %arg14: memref<128x128xbf16, #tpu.memory_space<vmem>>, %arg15: memref<1x128xf32, #tpu.memory_space<vmem>>, %arg16: memref<128x128xbf16, #tpu.memory_space<vmem>>, %arg17: memref<1x128xf32, #tpu.memory_space<vmem>>, %arg18: memref<6x128xbf16, #tpu.memory_space<vmem>>, %arg19: memref<128x128xbf16, #tpu.memory_space<vmem>>, %arg20: memref<1x128xf32, #tpu.memory_space<vmem>>, %arg21: memref<128x128xbf16, #tpu.memory_space<vmem>>, %arg22: memref<1x128xf32, #tpu.memory_space<vmem>>, %arg23: memref<12x128xf32, #tpu.memory_space<vmem>>, %arg24: memref<5x128xf32, #tpu.memory_space<vmem>>, %arg25: memref<6x128xf32, #tpu.memory_space<vmem>>, %arg26: memref<12x128xf32, #tpu.memory_space<vmem>>) attributes {dimension_semantics = [], scalar_prefetch = 0 : i64, scratch_operands = 1 : i64, tpu.core_type = #tpu.core_type<tc>} {
    %c0 = arith.constant 0 : index
    %c0_0 = arith.constant 0 : index
    %0 = vector.load %arg0[%c0, %c0_0] : memref<12x12xbf16, #tpu.memory_space<vmem>>, vector<12x12xbf16>
    %c0_1 = arith.constant 0 : index
    %c0_2 = arith.constant 0 : index
    %1 = vector.load %arg1[%c0_1, %c0_2] : memref<12x128xbf16, #tpu.memory_space<vmem>>, vector<12x128xbf16>
    %c0_3 = arith.constant 0 : index
    %c0_4 = arith.constant 0 : index
    %2 = vector.load %arg2[%c0_3, %c0_4] : memref<128x128xbf16, #tpu.memory_space<vmem>>, vector<128x128xbf16>
    %cst = arith.constant dense<0.000000e+00> : vector<12x128xf32>
    %3 = tpu.matmul %1, %2, %cst {dimension_numbers = #tpu.dot_dimension_numbers<[1], [0], [0], [1], [0, 0, 1, 1], [], []>} : vector<12x128xbf16>, vector<128x128xbf16>, vector<12x128xf32> -> vector<12x128xf32>
    %4 = arith.truncf %3 : vector<12x128xf32> to vector<12x128xbf16>
    %cst_5 = arith.constant dense<0.000000e+00> : vector<12x128xf32>
    %5 = tpu.matmul %0, %4, %cst_5 {dimension_numbers = #tpu.dot_dimension_numbers<[1], [0], [0], [1], [0, 0, 1, 1], [], []>} : vector<12x12xbf16>, vector<12x128xbf16>, vector<12x128xf32> -> vector<12x128xf32>
    %c0_6 = arith.constant 0 : index
    %c0_7 = arith.constant 0 : index
    %6 = vector.load %arg3[%c0_6, %c0_7] : memref<1x128xf32, #tpu.memory_space<vmem>>, vector<1x128xf32>
    %7 = vector.broadcast %6 : vector<1x128xf32> to vector<12x128xf32>
    %8 = arith.addf %5, %7 : vector<12x128xf32>
    %cst_8 = arith.constant 0.000000e+00 : f32
    %9 = vector.broadcast %cst_8 : f32 to vector<12x128xf32>
    %10 = arith.maximumf %8, %9 : vector<12x128xf32>
    %11 = arith.truncf %10 : vector<12x128xf32> to vector<12x128xbf16>
    %c0_9 = arith.constant 0 : index
    %c0_10 = arith.constant 0 : index
    %12 = vector.load %arg4[%c0_9, %c0_10] : memref<128x128xbf16, #tpu.memory_space<vmem>>, vector<128x128xbf16>
    %cst_11 = arith.constant dense<0.000000e+00> : vector<12x128xf32>
    %13 = tpu.matmul %11, %12, %cst_11 {dimension_numbers = #tpu.dot_dimension_numbers<[1], [0], [0], [1], [0, 0, 1, 1], [], []>} : vector<12x128xbf16>, vector<128x128xbf16>, vector<12x128xf32> -> vector<12x128xf32>
    %14 = arith.truncf %13 : vector<12x128xf32> to vector<12x128xbf16>
    %cst_12 = arith.constant dense<0.000000e+00> : vector<12x128xf32>
    %15 = tpu.matmul %0, %14, %cst_12 {dimension_numbers = #tpu.dot_dimension_numbers<[1], [0], [0], [1], [0, 0, 1, 1], [], []>} : vector<12x12xbf16>, vector<12x128xbf16>, vector<12x128xf32> -> vector<12x128xf32>
    %c0_13 = arith.constant 0 : index
    %c0_14 = arith.constant 0 : index
    %16 = vector.load %arg5[%c0_13, %c0_14] : memref<1x128xf32, #tpu.memory_space<vmem>>, vector<1x128xf32>
    %17 = vector.broadcast %16 : vector<1x128xf32> to vector<12x128xf32>
    %18 = arith.addf %15, %17 : vector<12x128xf32>
    %c0_15 = arith.constant 0 : index
    %c0_16 = arith.constant 0 : index
    %19 = vector.load %arg26[%c0_15, %c0_16] : memref<12x128xf32, #tpu.memory_space<vmem>>, vector<12x128xf32>
    tpu.vector_store %arg26[%c0_15, %c0_16], %18 {strides = array<i32>} : memref<12x128xf32, #tpu.memory_space<vmem>>, vector<12x128xf32>,
    %20 = tpu.iota {dimensions = array<i32: 0>} : vector<5x1xi32>
    %cst_17 = arith.constant 0.000000e+00 : f32
    %21 = vector.broadcast %cst_17 : f32 to vector<5x128xf32>
    %cst_18 = arith.constant 0.000000e+00 : f32
    %22 = vector.broadcast %cst_18 : f32 to vector<5x1xf32>
    %c0_i32 = arith.constant 0 : i32
    %23 = arith.index_cast %c0_i32 : i32 to index
    %24 = memref.load %arg6[%23] : memref<20xi32, #tpu.memory_space<smem>>
    %25 = arith.index_cast %c0_i32 : i32 to index
    %26 = memref.load %arg7[%25] : memref<20xi32, #tpu.memory_space<smem>>
    %27 = arith.index_cast %c0_i32 : i32 to index
    %28 = memref.load %arg8[%27] : memref<20xi32, #tpu.memory_space<smem>>
    %29 = arith.index_cast %24 : i32 to index
    %c0_19 = arith.constant 0 : index
    %30 = vector.load %arg26[%29, %c0_19] : memref<12x128xf32, #tpu.memory_space<vmem>>, vector<1x128xf32>
    %31 = arith.index_cast %26 : i32 to index
    %c0_20 = arith.constant 0 : index
    %32 = vector.load %arg26[%31, %c0_20] : memref<12x128xf32, #tpu.memory_space<vmem>>, vector<1x128xf32>
    %33 = vector.broadcast %28 : i32 to vector<5x1xi32>
    %34 = arith.cmpi eq, %20, %33 : vector<5x1xi32>
    %35 = arith.extui %34 : vector<5x1xi1> to vector<5x1xi32>
    %36 = arith.sitofp %35 : vector<5x1xi32> to vector<5x1xf32>
    %37 = vector.broadcast %36 : vector<5x1xf32> to vector<5x128xf32>
    %38 = vector.broadcast %30 : vector<1x128xf32> to vector<5x128xf32>
    %39 = arith.mulf %37, %38 : vector<5x128xf32>
    %40 = arith.addf %21, %39 : vector<5x128xf32>
    %41 = vector.broadcast %36 : vector<5x1xf32> to vector<5x128xf32>
    %42 = vector.broadcast %32 : vector<1x128xf32> to vector<5x128xf32>
    %43 = arith.mulf %41, %42 : vector<5x128xf32>
    %44 = arith.addf %21, %43 : vector<5x128xf32>
    %45 = arith.addf %22, %36 : vector<5x1xf32>
    %c1_i32 = arith.constant 1 : i32
    %46 = arith.index_cast %c1_i32 : i32 to index
    %47 = memref.load %arg6[%46] : memref<20xi32, #tpu.memory_space<smem>>
    %48 = arith.index_cast %c1_i32 : i32 to index
    %49 = memref.load %arg7[%48] : memref<20xi32, #tpu.memory_space<smem>>
    %50 = arith.index_cast %c1_i32 : i32 to index
    %51 = memref.load %arg8[%50] : memref<20xi32, #tpu.memory_space<smem>>
    %52 = arith.index_cast %47 : i32 to index
    %c0_21 = arith.constant 0 : index
    %53 = vector.load %arg26[%52, %c0_21] : memref<12x128xf32, #tpu.memory_space<vmem>>, vector<1x128xf32>
    %54 = arith.index_cast %49 : i32 to index
    %c0_22 = arith.constant 0 : index
    %55 = vector.load %arg26[%54, %c0_22] : memref<12x128xf32, #tpu.memory_space<vmem>>, vector<1x128xf32>
    %56 = vector.broadcast %51 : i32 to vector<5x1xi32>
    %57 = arith.cmpi eq, %20, %56 : vector<5x1xi32>
    %58 = arith.extui %57 : vector<5x1xi1> to vector<5x1xi32>
    %59 = arith.sitofp %58 : vector<5x1xi32> to vector<5x1xf32>
    %60 = vector.broadcast %59 : vector<5x1xf32> to vector<5x128xf32>
    %61 = vector.broadcast %53 : vector<1x128xf32> to vector<5x128xf32>
    %62 = arith.mulf %60, %61 : vector<5x128xf32>
    %63 = arith.addf %40, %62 : vector<5x128xf32>
    %64 = vector.broadcast %59 : vector<5x1xf32> to vector<5x128xf32>
    %65 = vector.broadcast %55 : vector<1x128xf32> to vector<5x128xf32>
    %66 = arith.mulf %64, %65 : vector<5x128xf32>
    %67 = arith.addf %44, %66 : vector<5x128xf32>
    %68 = arith.addf %45, %59 : vector<5x1xf32>
    %c2_i32 = arith.constant 2 : i32
    %69 = arith.index_cast %c2_i32 : i32 to index
    %70 = memref.load %arg6[%69] : memref<20xi32, #tpu.memory_space<smem>>
    %71 = arith.index_cast %c2_i32 : i32 to index
    %72 = memref.load %arg7[%71] : memref<20xi32, #tpu.memory_space<smem>>
    %73 = arith.index_cast %c2_i32 : i32 to index
    %74 = memref.load %arg8[%73] : memref<20xi32, #tpu.memory_space<smem>>
    %75 = arith.index_cast %70 : i32 to index
    %c0_23 = arith.constant 0 : index
    %76 = vector.load %arg26[%75, %c0_23] : memref<12x128xf32, #tpu.memory_space<vmem>>, vector<1x128xf32>
    %77 = arith.index_cast %72 : i32 to index
    %c0_24 = arith.constant 0 : index
    %78 = vector.load %arg26[%77, %c0_24] : memref<12x128xf32, #tpu.memory_space<vmem>>, vector<1x128xf32>
    %79 = vector.broadcast %74 : i32 to vector<5x1xi32>
    %80 = arith.cmpi eq, %20, %79 : vector<5x1xi32>
    %81 = arith.extui %80 : vector<5x1xi1> to vector<5x1xi32>
    %82 = arith.sitofp %81 : vector<5x1xi32> to vector<5x1xf32>
    %83 = vector.broadcast %82 : vector<5x1xf32> to vector<5x128xf32>
    %84 = vector.broadcast %76 : vector<1x128xf32> to vector<5x128xf32>
    %85 = arith.mulf %83, %84 : vector<5x128xf32>
    %86 = arith.addf %63, %85 : vector<5x128xf32>
    %87 = vector.broadcast %82 : vector<5x1xf32> to vector<5x128xf32>
    %88 = vector.broadcast %78 : vector<1x128xf32> to vector<5x128xf32>
    %89 = arith.mulf %87, %88 : vector<5x128xf32>
    %90 = arith.addf %67, %89 : vector<5x128xf32>
    %91 = arith.addf %68, %82 : vector<5x1xf32>
    %c3_i32 = arith.constant 3 : i32
    %92 = arith.index_cast %c3_i32 : i32 to index
    %93 = memref.load %arg6[%92] : memref<20xi32, #tpu.memory_space<smem>>
    %94 = arith.index_cast %c3_i32 : i32 to index
    %95 = memref.load %arg7[%94] : memref<20xi32, #tpu.memory_space<smem>>
    %96 = arith.index_cast %c3_i32 : i32 to index
    %97 = memref.load %arg8[%96] : memref<20xi32, #tpu.memory_space<smem>>
    %98 = arith.index_cast %93 : i32 to index
    %c0_25 = arith.constant 0 : index
    %99 = vector.load %arg26[%98, %c0_25] : memref<12x128xf32, #tpu.memory_space<vmem>>, vector<1x128xf32>
    %100 = arith.index_cast %95 : i32 to index
    %c0_26 = arith.constant 0 : index
    %101 = vector.load %arg26[%100, %c0_26] : memref<12x128xf32, #tpu.memory_space<vmem>>, vector<1x128xf32>
    %102 = vector.broadcast %97 : i32 to vector<5x1xi32>
    %103 = arith.cmpi eq, %20, %102 : vector<5x1xi32>
    %104 = arith.extui %103 : vector<5x1xi1> to vector<5x1xi32>
    %105 = arith.sitofp %104 : vector<5x1xi32> to vector<5x1xf32>
    %106 = vector.broadcast %105 : vector<5x1xf32> to vector<5x128xf32>
    %107 = vector.broadcast %99 : vector<1x128xf32> to vector<5x128xf32>
    %108 = arith.mulf %106, %107 : vector<5x128xf32>
    %109 = arith.addf %86, %108 : vector<5x128xf32>
    %110 = vector.broadcast %105 : vector<5x1xf32> to vector<5x128xf32>
    %111 = vector.broadcast %101 : vector<1x128xf32> to vector<5x128xf32>
    %112 = arith.mulf %110, %111 : vector<5x128xf32>
    %113 = arith.addf %90, %112 : vector<5x128xf32>
    %114 = arith.addf %91, %105 : vector<5x1xf32>
    %c4_i32 = arith.constant 4 : i32
    %115 = arith.index_cast %c4_i32 : i32 to index
    %116 = memref.load %arg6[%115] : memref<20xi32, #tpu.memory_space<smem>>
    %117 = arith.index_cast %c4_i32 : i32 to index
    %118 = memref.load %arg7[%117] : memref<20xi32, #tpu.memory_space<smem>>
    %119 = arith.index_cast %c4_i32 : i32 to index
    %120 = memref.load %arg8[%119] : memref<20xi32, #tpu.memory_space<smem>>
    %121 = arith.index_cast %116 : i32 to index
    %c0_27 = arith.constant 0 : index
    %122 = vector.load %arg26[%121, %c0_27] : memref<12x128xf32, #tpu.memory_space<vmem>>, vector<1x128xf32>
    %123 = arith.index_cast %118 : i32 to index
    %c0_28 = arith.constant 0 : index
    %124 = vector.load %arg26[%123, %c0_28] : memref<12x128xf32, #tpu.memory_space<vmem>>, vector<1x128xf32>
    %125 = vector.broadcast %120 : i32 to vector<5x1xi32>
    %126 = arith.cmpi eq, %20, %125 : vector<5x1xi32>
    %127 = arith.extui %126 : vector<5x1xi1> to vector<5x1xi32>
    %128 = arith.sitofp %127 : vector<5x1xi32> to vector<5x1xf32>
    %129 = vector.broadcast %128 : vector<5x1xf32> to vector<5x128xf32>
    %130 = vector.broadcast %122 : vector<1x128xf32> to vector<5x128xf32>
    %131 = arith.mulf %129, %130 : vector<5x128xf32>
    %132 = arith.addf %109, %131 : vector<5x128xf32>
    %133 = vector.broadcast %128 : vector<5x1xf32> to vector<5x128xf32>
    %134 = vector.broadcast %124 : vector<1x128xf32> to vector<5x128xf32>
    %135 = arith.mulf %133, %134 : vector<5x128xf32>
    %136 = arith.addf %113, %135 : vector<5x128xf32>
    %137 = arith.addf %114, %128 : vector<5x1xf32>
    %c5_i32 = arith.constant 5 : i32
    %138 = arith.index_cast %c5_i32 : i32 to index
    %139 = memref.load %arg6[%138] : memref<20xi32, #tpu.memory_space<smem>>
    %140 = arith.index_cast %c5_i32 : i32 to index
    %141 = memref.load %arg7[%140] : memref<20xi32, #tpu.memory_space<smem>>
    %142 = arith.index_cast %c5_i32 : i32 to index
    %143 = memref.load %arg8[%142] : memref<20xi32, #tpu.memory_space<smem>>
    %144 = arith.index_cast %139 : i32 to index
    %c0_29 = arith.constant 0 : index
    %145 = vector.load %arg26[%144, %c0_29] : memref<12x128xf32, #tpu.memory_space<vmem>>, vector<1x128xf32>
    %146 = arith.index_cast %141 : i32 to index
    %c0_30 = arith.constant 0 : index
    %147 = vector.load %arg26[%146, %c0_30] : memref<12x128xf32, #tpu.memory_space<vmem>>, vector<1x128xf32>
    %148 = vector.broadcast %143 : i32 to vector<5x1xi32>
    %149 = arith.cmpi eq, %20, %148 : vector<5x1xi32>
    %150 = arith.extui %149 : vector<5x1xi1> to vector<5x1xi32>
    %151 = arith.sitofp %150 : vector<5x1xi32> to vector<5x1xf32>
    %152 = vector.broadcast %151 : vector<5x1xf32> to vector<5x128xf32>
    %153 = vector.broadcast %145 : vector<1x128xf32> to vector<5x128xf32>
    %154 = arith.mulf %152, %153 : vector<5x128xf32>
    %155 = arith.addf %132, %154 : vector<5x128xf32>
    %156 = vector.broadcast %151 : vector<5x1xf32> to vector<5x128xf32>
    %157 = vector.broadcast %147 : vector<1x128xf32> to vector<5x128xf32>
    %158 = arith.mulf %156, %157 : vector<5x128xf32>
    %159 = arith.addf %136, %158 : vector<5x128xf32>
    %160 = arith.addf %137, %151 : vector<5x1xf32>
    %c6_i32 = arith.constant 6 : i32
    %161 = arith.index_cast %c6_i32 : i32 to index
    %162 = memref.load %arg6[%161] : memref<20xi32, #tpu.memory_space<smem>>
    %163 = arith.index_cast %c6_i32 : i32 to index
    %164 = memref.load %arg7[%163] : memref<20xi32, #tpu.memory_space<smem>>
    %165 = arith.index_cast %c6_i32 : i32 to index
    %166 = memref.load %arg8[%165] : memref<20xi32, #tpu.memory_space<smem>>
    %167 = arith.index_cast %162 : i32 to index
    %c0_31 = arith.constant 0 : index
    %168 = vector.load %arg26[%167, %c0_31] : memref<12x128xf32, #tpu.memory_space<vmem>>, vector<1x128xf32>
    %169 = arith.index_cast %164 : i32 to index
    %c0_32 = arith.constant 0 : index
    %170 = vector.load %arg26[%169, %c0_32] : memref<12x128xf32, #tpu.memory_space<vmem>>, vector<1x128xf32>
    %171 = vector.broadcast %166 : i32 to vector<5x1xi32>
    %172 = arith.cmpi eq, %20, %171 : vector<5x1xi32>
    %173 = arith.extui %172 : vector<5x1xi1> to vector<5x1xi32>
    %174 = arith.sitofp %173 : vector<5x1xi32> to vector<5x1xf32>
    %175 = vector.broadcast %174 : vector<5x1xf32> to vector<5x128xf32>
    %176 = vector.broadcast %168 : vector<1x128xf32> to vector<5x128xf32>
    %177 = arith.mulf %175, %176 : vector<5x128xf32>
    %178 = arith.addf %155, %177 : vector<5x128xf32>
    %179 = vector.broadcast %174 : vector<5x1xf32> to vector<5x128xf32>
    %180 = vector.broadcast %170 : vector<1x128xf32> to vector<5x128xf32>
    %181 = arith.mulf %179, %180 : vector<5x128xf32>
    %182 = arith.addf %159, %181 : vector<5x128xf32>
    %183 = arith.addf %160, %174 : vector<5x1xf32>
    %c7_i32 = arith.constant 7 : i32
    %184 = arith.index_cast %c7_i32 : i32 to index
    %185 = memref.load %arg6[%184] : memref<20xi32, #tpu.memory_space<smem>>
    %186 = arith.index_cast %c7_i32 : i32 to index
    %187 = memref.load %arg7[%186] : memref<20xi32, #tpu.memory_space<smem>>
    %188 = arith.index_cast %c7_i32 : i32 to index
    %189 = memref.load %arg8[%188] : memref<20xi32, #tpu.memory_space<smem>>
    %190 = arith.index_cast %185 : i32 to index
    %c0_33 = arith.constant 0 : index
    %191 = vector.load %arg26[%190, %c0_33] : memref<12x128xf32, #tpu.memory_space<vmem>>, vector<1x128xf32>
    %192 = arith.index_cast %187 : i32 to index
    %c0_34 = arith.constant 0 : index
    %193 = vector.load %arg26[%192, %c0_34] : memref<12x128xf32, #tpu.memory_space<vmem>>, vector<1x128xf32>
    %194 = vector.broadcast %189 : i32 to vector<5x1xi32>
    %195 = arith.cmpi eq, %20, %194 : vector<5x1xi32>
    %196 = arith.extui %195 : vector<5x1xi1> to vector<5x1xi32>
    %197 = arith.sitofp %196 : vector<5x1xi32> to vector<5x1xf32>
    %198 = vector.broadcast %197 : vector<5x1xf32> to vector<5x128xf32>
    %199 = vector.broadcast %191 : vector<1x128xf32> to vector<5x128xf32>
    %200 = arith.mulf %198, %199 : vector<5x128xf32>
    %201 = arith.addf %178, %200 : vector<5x128xf32>
    %202 = vector.broadcast %197 : vector<5x1xf32> to vector<5x128xf32>
    %203 = vector.broadcast %193 : vector<1x128xf32> to vector<5x128xf32>
    %204 = arith.mulf %202, %203 : vector<5x128xf32>
    %205 = arith.addf %182, %204 : vector<5x128xf32>
    %206 = arith.addf %183, %197 : vector<5x1xf32>
    %c8_i32 = arith.constant 8 : i32
    %207 = arith.index_cast %c8_i32 : i32 to index
    %208 = memref.load %arg6[%207] : memref<20xi32, #tpu.memory_space<smem>>
    %209 = arith.index_cast %c8_i32 : i32 to index
    %210 = memref.load %arg7[%209] : memref<20xi32, #tpu.memory_space<smem>>
    %211 = arith.index_cast %c8_i32 : i32 to index
    %212 = memref.load %arg8[%211] : memref<20xi32, #tpu.memory_space<smem>>
    %213 = arith.index_cast %208 : i32 to index
    %c0_35 = arith.constant 0 : index
    %214 = vector.load %arg26[%213, %c0_35] : memref<12x128xf32, #tpu.memory_space<vmem>>, vector<1x128xf32>
    %215 = arith.index_cast %210 : i32 to index
    %c0_36 = arith.constant 0 : index
    %216 = vector.load %arg26[%215, %c0_36] : memref<12x128xf32, #tpu.memory_space<vmem>>, vector<1x128xf32>
    %217 = vector.broadcast %212 : i32 to vector<5x1xi32>
    %218 = arith.cmpi eq, %20, %217 : vector<5x1xi32>
    %219 = arith.extui %218 : vector<5x1xi1> to vector<5x1xi32>
    %220 = arith.sitofp %219 : vector<5x1xi32> to vector<5x1xf32>
    %221 = vector.broadcast %220 : vector<5x1xf32> to vector<5x128xf32>
    %222 = vector.broadcast %214 : vector<1x128xf32> to vector<5x128xf32>
    %223 = arith.mulf %221, %222 : vector<5x128xf32>
    %224 = arith.addf %201, %223 : vector<5x128xf32>
    %225 = vector.broadcast %220 : vector<5x1xf32> to vector<5x128xf32>
    %226 = vector.broadcast %216 : vector<1x128xf32> to vector<5x128xf32>
    %227 = arith.mulf %225, %226 : vector<5x128xf32>
    %228 = arith.addf %205, %227 : vector<5x128xf32>
    %229 = arith.addf %206, %220 : vector<5x1xf32>
    %c9_i32 = arith.constant 9 : i32
    %230 = arith.index_cast %c9_i32 : i32 to index
    %231 = memref.load %arg6[%230] : memref<20xi32, #tpu.memory_space<smem>>
    %232 = arith.index_cast %c9_i32 : i32 to index
    %233 = memref.load %arg7[%232] : memref<20xi32, #tpu.memory_space<smem>>
    %234 = arith.index_cast %c9_i32 : i32 to index
    %235 = memref.load %arg8[%234] : memref<20xi32, #tpu.memory_space<smem>>
    %236 = arith.index_cast %231 : i32 to index
    %c0_37 = arith.constant 0 : index
    %237 = vector.load %arg26[%236, %c0_37] : memref<12x128xf32, #tpu.memory_space<vmem>>, vector<1x128xf32>
    %238 = arith.index_cast %233 : i32 to index
    %c0_38 = arith.constant 0 : index
    %239 = vector.load %arg26[%238, %c0_38] : memref<12x128xf32, #tpu.memory_space<vmem>>, vector<1x128xf32>
    %240 = vector.broadcast %235 : i32 to vector<5x1xi32>
    %241 = arith.cmpi eq, %20, %240 : vector<5x1xi32>
    %242 = arith.extui %241 : vector<5x1xi1> to vector<5x1xi32>
    %243 = arith.sitofp %242 : vector<5x1xi32> to vector<5x1xf32>
    %244 = vector.broadcast %243 : vector<5x1xf32> to vector<5x128xf32>
    %245 = vector.broadcast %237 : vector<1x128xf32> to vector<5x128xf32>
    %246 = arith.mulf %244, %245 : vector<5x128xf32>
    %247 = arith.addf %224, %246 : vector<5x128xf32>
    %248 = vector.broadcast %243 : vector<5x1xf32> to vector<5x128xf32>
    %249 = vector.broadcast %239 : vector<1x128xf32> to vector<5x128xf32>
    %250 = arith.mulf %248, %249 : vector<5x128xf32>
    %251 = arith.addf %228, %250 : vector<5x128xf32>
    %252 = arith.addf %229, %243 : vector<5x1xf32>
    %c10_i32 = arith.constant 10 : i32
    %253 = arith.index_cast %c10_i32 : i32 to index
    %254 = memref.load %arg6[%253] : memref<20xi32, #tpu.memory_space<smem>>
    %255 = arith.index_cast %c10_i32 : i32 to index
    %256 = memref.load %arg7[%255] : memref<20xi32, #tpu.memory_space<smem>>
    %257 = arith.index_cast %c10_i32 : i32 to index
    %258 = memref.load %arg8[%257] : memref<20xi32, #tpu.memory_space<smem>>
    %259 = arith.index_cast %254 : i32 to index
    %c0_39 = arith.constant 0 : index
    %260 = vector.load %arg26[%259, %c0_39] : memref<12x128xf32, #tpu.memory_space<vmem>>, vector<1x128xf32>
    %261 = arith.index_cast %256 : i32 to index
    %c0_40 = arith.constant 0 : index
    %262 = vector.load %arg26[%261, %c0_40] : memref<12x128xf32, #tpu.memory_space<vmem>>, vector<1x128xf32>
    %263 = vector.broadcast %258 : i32 to vector<5x1xi32>
    %264 = arith.cmpi eq, %20, %263 : vector<5x1xi32>
    %265 = arith.extui %264 : vector<5x1xi1> to vector<5x1xi32>
    %266 = arith.sitofp %265 : vector<5x1xi32> to vector<5x1xf32>
    %267 = vector.broadcast %266 : vector<5x1xf32> to vector<5x128xf32>
    %268 = vector.broadcast %260 : vector<1x128xf32> to vector<5x128xf32>
    %269 = arith.mulf %267, %268 : vector<5x128xf32>
    %270 = arith.addf %247, %269 : vector<5x128xf32>
    %271 = vector.broadcast %266 : vector<5x1xf32> to vector<5x128xf32>
    %272 = vector.broadcast %262 : vector<1x128xf32> to vector<5x128xf32>
    %273 = arith.mulf %271, %272 : vector<5x128xf32>
    %274 = arith.addf %251, %273 : vector<5x128xf32>
    %275 = arith.addf %252, %266 : vector<5x1xf32>
    %c11_i32 = arith.constant 11 : i32
    %276 = arith.index_cast %c11_i32 : i32 to index
    %277 = memref.load %arg6[%276] : memref<20xi32, #tpu.memory_space<smem>>
    %278 = arith.index_cast %c11_i32 : i32 to index
    %279 = memref.load %arg7[%278] : memref<20xi32, #tpu.memory_space<smem>>
    %280 = arith.index_cast %c11_i32 : i32 to index
    %281 = memref.load %arg8[%280] : memref<20xi32, #tpu.memory_space<smem>>
    %282 = arith.index_cast %277 : i32 to index
    %c0_41 = arith.constant 0 : index
    %283 = vector.load %arg26[%282, %c0_41] : memref<12x128xf32, #tpu.memory_space<vmem>>, vector<1x128xf32>
    %284 = arith.index_cast %279 : i32 to index
    %c0_42 = arith.constant 0 : index
    %285 = vector.load %arg26[%284, %c0_42] : memref<12x128xf32, #tpu.memory_space<vmem>>, vector<1x128xf32>
    %286 = vector.broadcast %281 : i32 to vector<5x1xi32>
    %287 = arith.cmpi eq, %20, %286 : vector<5x1xi32>
    %288 = arith.extui %287 : vector<5x1xi1> to vector<5x1xi32>
    %289 = arith.sitofp %288 : vector<5x1xi32> to vector<5x1xf32>
    %290 = vector.broadcast %289 : vector<5x1xf32> to vector<5x128xf32>
    %291 = vector.broadcast %283 : vector<1x128xf32> to vector<5x128xf32>
    %292 = arith.mulf %290, %291 : vector<5x128xf32>
    %293 = arith.addf %270, %292 : vector<5x128xf32>
    %294 = vector.broadcast %289 : vector<5x1xf32> to vector<5x128xf32>
    %295 = vector.broadcast %285 : vector<1x128xf32> to vector<5x128xf32>
    %296 = arith.mulf %294, %295 : vector<5x128xf32>
    %297 = arith.addf %274, %296 : vector<5x128xf32>
    %298 = arith.addf %275, %289 : vector<5x1xf32>
    %c12_i32 = arith.constant 12 : i32
    %299 = arith.index_cast %c12_i32 : i32 to index
    %300 = memref.load %arg6[%299] : memref<20xi32, #tpu.memory_space<smem>>
    %301 = arith.index_cast %c12_i32 : i32 to index
    %302 = memref.load %arg7[%301] : memref<20xi32, #tpu.memory_space<smem>>
    %303 = arith.index_cast %c12_i32 : i32 to index
    %304 = memref.load %arg8[%303] : memref<20xi32, #tpu.memory_space<smem>>
    %305 = arith.index_cast %300 : i32 to index
    %c0_43 = arith.constant 0 : index
    %306 = vector.load %arg26[%305, %c0_43] : memref<12x128xf32, #tpu.memory_space<vmem>>, vector<1x128xf32>
    %307 = arith.index_cast %302 : i32 to index
    %c0_44 = arith.constant 0 : index
    %308 = vector.load %arg26[%307, %c0_44] : memref<12x128xf32, #tpu.memory_space<vmem>>, vector<1x128xf32>
    %309 = vector.broadcast %304 : i32 to vector<5x1xi32>
    %310 = arith.cmpi eq, %20, %309 : vector<5x1xi32>
    %311 = arith.extui %310 : vector<5x1xi1> to vector<5x1xi32>
    %312 = arith.sitofp %311 : vector<5x1xi32> to vector<5x1xf32>
    %313 = vector.broadcast %312 : vector<5x1xf32> to vector<5x128xf32>
    %314 = vector.broadcast %306 : vector<1x128xf32> to vector<5x128xf32>
    %315 = arith.mulf %313, %314 : vector<5x128xf32>
    %316 = arith.addf %293, %315 : vector<5x128xf32>
    %317 = vector.broadcast %312 : vector<5x1xf32> to vector<5x128xf32>
    %318 = vector.broadcast %308 : vector<1x128xf32> to vector<5x128xf32>
    %319 = arith.mulf %317, %318 : vector<5x128xf32>
    %320 = arith.addf %297, %319 : vector<5x128xf32>
    %321 = arith.addf %298, %312 : vector<5x1xf32>
    %c13_i32 = arith.constant 13 : i32
    %322 = arith.index_cast %c13_i32 : i32 to index
    %323 = memref.load %arg6[%322] : memref<20xi32, #tpu.memory_space<smem>>
    %324 = arith.index_cast %c13_i32 : i32 to index
    %325 = memref.load %arg7[%324] : memref<20xi32, #tpu.memory_space<smem>>
    %326 = arith.index_cast %c13_i32 : i32 to index
    %327 = memref.load %arg8[%326] : memref<20xi32, #tpu.memory_space<smem>>
    %328 = arith.index_cast %323 : i32 to index
    %c0_45 = arith.constant 0 : index
    %329 = vector.load %arg26[%328, %c0_45] : memref<12x128xf32, #tpu.memory_space<vmem>>, vector<1x128xf32>
    %330 = arith.index_cast %325 : i32 to index
    %c0_46 = arith.constant 0 : index
    %331 = vector.load %arg26[%330, %c0_46] : memref<12x128xf32, #tpu.memory_space<vmem>>, vector<1x128xf32>
    %332 = vector.broadcast %327 : i32 to vector<5x1xi32>
    %333 = arith.cmpi eq, %20, %332 : vector<5x1xi32>
    %334 = arith.extui %333 : vector<5x1xi1> to vector<5x1xi32>
    %335 = arith.sitofp %334 : vector<5x1xi32> to vector<5x1xf32>
    %336 = vector.broadcast %335 : vector<5x1xf32> to vector<5x128xf32>
    %337 = vector.broadcast %329 : vector<1x128xf32> to vector<5x128xf32>
    %338 = arith.mulf %336, %337 : vector<5x128xf32>
    %339 = arith.addf %316, %338 : vector<5x128xf32>
    %340 = vector.broadcast %335 : vector<5x1xf32> to vector<5x128xf32>
    %341 = vector.broadcast %331 : vector<1x128xf32> to vector<5x128xf32>
    %342 = arith.mulf %340, %341 : vector<5x128xf32>
    %343 = arith.addf %320, %342 : vector<5x128xf32>
    %344 = arith.addf %321, %335 : vector<5x1xf32>
    %c14_i32 = arith.constant 14 : i32
    %345 = arith.index_cast %c14_i32 : i32 to index
    %346 = memref.load %arg6[%345] : memref<20xi32, #tpu.memory_space<smem>>
    %347 = arith.index_cast %c14_i32 : i32 to index
    %348 = memref.load %arg7[%347] : memref<20xi32, #tpu.memory_space<smem>>
    %349 = arith.index_cast %c14_i32 : i32 to index
    %350 = memref.load %arg8[%349] : memref<20xi32, #tpu.memory_space<smem>>
    %351 = arith.index_cast %346 : i32 to index
    %c0_47 = arith.constant 0 : index
    %352 = vector.load %arg26[%351, %c0_47] : memref<12x128xf32, #tpu.memory_space<vmem>>, vector<1x128xf32>
    %353 = arith.index_cast %348 : i32 to index
    %c0_48 = arith.constant 0 : index
    %354 = vector.load %arg26[%353, %c0_48] : memref<12x128xf32, #tpu.memory_space<vmem>>, vector<1x128xf32>
    %355 = vector.broadcast %350 : i32 to vector<5x1xi32>
    %356 = arith.cmpi eq, %20, %355 : vector<5x1xi32>
    %357 = arith.extui %356 : vector<5x1xi1> to vector<5x1xi32>
    %358 = arith.sitofp %357 : vector<5x1xi32> to vector<5x1xf32>
    %359 = vector.broadcast %358 : vector<5x1xf32> to vector<5x128xf32>
    %360 = vector.broadcast %352 : vector<1x128xf32> to vector<5x128xf32>
    %361 = arith.mulf %359, %360 : vector<5x128xf32>
    %362 = arith.addf %339, %361 : vector<5x128xf32>
    %363 = vector.broadcast %358 : vector<5x1xf32> to vector<5x128xf32>
    %364 = vector.broadcast %354 : vector<1x128xf32> to vector<5x128xf32>
    %365 = arith.mulf %363, %364 : vector<5x128xf32>
    %366 = arith.addf %343, %365 : vector<5x128xf32>
    %367 = arith.addf %344, %358 : vector<5x1xf32>
    %c15_i32 = arith.constant 15 : i32
    %368 = arith.index_cast %c15_i32 : i32 to index
    %369 = memref.load %arg6[%368] : memref<20xi32, #tpu.memory_space<smem>>
    %370 = arith.index_cast %c15_i32 : i32 to index
    %371 = memref.load %arg7[%370] : memref<20xi32, #tpu.memory_space<smem>>
    %372 = arith.index_cast %c15_i32 : i32 to index
    %373 = memref.load %arg8[%372] : memref<20xi32, #tpu.memory_space<smem>>
    %374 = arith.index_cast %369 : i32 to index
    %c0_49 = arith.constant 0 : index
    %375 = vector.load %arg26[%374, %c0_49] : memref<12x128xf32, #tpu.memory_space<vmem>>, vector<1x128xf32>
    %376 = arith.index_cast %371 : i32 to index
    %c0_50 = arith.constant 0 : index
    %377 = vector.load %arg26[%376, %c0_50] : memref<12x128xf32, #tpu.memory_space<vmem>>, vector<1x128xf32>
    %378 = vector.broadcast %373 : i32 to vector<5x1xi32>
    %379 = arith.cmpi eq, %20, %378 : vector<5x1xi32>
    %380 = arith.extui %379 : vector<5x1xi1> to vector<5x1xi32>
    %381 = arith.sitofp %380 : vector<5x1xi32> to vector<5x1xf32>
    %382 = vector.broadcast %381 : vector<5x1xf32> to vector<5x128xf32>
    %383 = vector.broadcast %375 : vector<1x128xf32> to vector<5x128xf32>
    %384 = arith.mulf %382, %383 : vector<5x128xf32>
    %385 = arith.addf %362, %384 : vector<5x128xf32>
    %386 = vector.broadcast %381 : vector<5x1xf32> to vector<5x128xf32>
    %387 = vector.broadcast %377 : vector<1x128xf32> to vector<5x128xf32>
    %388 = arith.mulf %386, %387 : vector<5x128xf32>
    %389 = arith.addf %366, %388 : vector<5x128xf32>
    %390 = arith.addf %367, %381 : vector<5x1xf32>
    %c16_i32 = arith.constant 16 : i32
    %391 = arith.index_cast %c16_i32 : i32 to index
    %392 = memref.load %arg6[%391] : memref<20xi32, #tpu.memory_space<smem>>
    %393 = arith.index_cast %c16_i32 : i32 to index
    %394 = memref.load %arg7[%393] : memref<20xi32, #tpu.memory_space<smem>>
    %395 = arith.index_cast %c16_i32 : i32 to index
    %396 = memref.load %arg8[%395] : memref<20xi32, #tpu.memory_space<smem>>
    %397 = arith.index_cast %392 : i32 to index
    %c0_51 = arith.constant 0 : index
    %398 = vector.load %arg26[%397, %c0_51] : memref<12x128xf32, #tpu.memory_space<vmem>>, vector<1x128xf32>
    %399 = arith.index_cast %394 : i32 to index
    %c0_52 = arith.constant 0 : index
    %400 = vector.load %arg26[%399, %c0_52] : memref<12x128xf32, #tpu.memory_space<vmem>>, vector<1x128xf32>
    %401 = vector.broadcast %396 : i32 to vector<5x1xi32>
    %402 = arith.cmpi eq, %20, %401 : vector<5x1xi32>
    %403 = arith.extui %402 : vector<5x1xi1> to vector<5x1xi32>
    %404 = arith.sitofp %403 : vector<5x1xi32> to vector<5x1xf32>
    %405 = vector.broadcast %404 : vector<5x1xf32> to vector<5x128xf32>
    %406 = vector.broadcast %398 : vector<1x128xf32> to vector<5x128xf32>
    %407 = arith.mulf %405, %406 : vector<5x128xf32>
    %408 = arith.addf %385, %407 : vector<5x128xf32>
    %409 = vector.broadcast %404 : vector<5x1xf32> to vector<5x128xf32>
    %410 = vector.broadcast %400 : vector<1x128xf32> to vector<5x128xf32>
    %411 = arith.mulf %409, %410 : vector<5x128xf32>
    %412 = arith.addf %389, %411 : vector<5x128xf32>
    %413 = arith.addf %390, %404 : vector<5x1xf32>
    %c17_i32 = arith.constant 17 : i32
    %414 = arith.index_cast %c17_i32 : i32 to index
    %415 = memref.load %arg6[%414] : memref<20xi32, #tpu.memory_space<smem>>
    %416 = arith.index_cast %c17_i32 : i32 to index
    %417 = memref.load %arg7[%416] : memref<20xi32, #tpu.memory_space<smem>>
    %418 = arith.index_cast %c17_i32 : i32 to index
    %419 = memref.load %arg8[%418] : memref<20xi32, #tpu.memory_space<smem>>
    %420 = arith.index_cast %415 : i32 to index
    %c0_53 = arith.constant 0 : index
    %421 = vector.load %arg26[%420, %c0_53] : memref<12x128xf32, #tpu.memory_space<vmem>>, vector<1x128xf32>
    %422 = arith.index_cast %417 : i32 to index
    %c0_54 = arith.constant 0 : index
    %423 = vector.load %arg26[%422, %c0_54] : memref<12x128xf32, #tpu.memory_space<vmem>>, vector<1x128xf32>
    %424 = vector.broadcast %419 : i32 to vector<5x1xi32>
    %425 = arith.cmpi eq, %20, %424 : vector<5x1xi32>
    %426 = arith.extui %425 : vector<5x1xi1> to vector<5x1xi32>
    %427 = arith.sitofp %426 : vector<5x1xi32> to vector<5x1xf32>
    %428 = vector.broadcast %427 : vector<5x1xf32> to vector<5x128xf32>
    %429 = vector.broadcast %421 : vector<1x128xf32> to vector<5x128xf32>
    %430 = arith.mulf %428, %429 : vector<5x128xf32>
    %431 = arith.addf %408, %430 : vector<5x128xf32>
    %432 = vector.broadcast %427 : vector<5x1xf32> to vector<5x128xf32>
    %433 = vector.broadcast %423 : vector<1x128xf32> to vector<5x128xf32>
    %434 = arith.mulf %432, %433 : vector<5x128xf32>
    %435 = arith.addf %412, %434 : vector<5x128xf32>
    %436 = arith.addf %413, %427 : vector<5x1xf32>
    %c18_i32 = arith.constant 18 : i32
    %437 = arith.index_cast %c18_i32 : i32 to index
    %438 = memref.load %arg6[%437] : memref<20xi32, #tpu.memory_space<smem>>
    %439 = arith.index_cast %c18_i32 : i32 to index
    %440 = memref.load %arg7[%439] : memref<20xi32, #tpu.memory_space<smem>>
    %441 = arith.index_cast %c18_i32 : i32 to index
    %442 = memref.load %arg8[%441] : memref<20xi32, #tpu.memory_space<smem>>
    %443 = arith.index_cast %438 : i32 to index
    %c0_55 = arith.constant 0 : index
    %444 = vector.load %arg26[%443, %c0_55] : memref<12x128xf32, #tpu.memory_space<vmem>>, vector<1x128xf32>
    %445 = arith.index_cast %440 : i32 to index
    %c0_56 = arith.constant 0 : index
    %446 = vector.load %arg26[%445, %c0_56] : memref<12x128xf32, #tpu.memory_space<vmem>>, vector<1x128xf32>
    %447 = vector.broadcast %442 : i32 to vector<5x1xi32>
    %448 = arith.cmpi eq, %20, %447 : vector<5x1xi32>
    %449 = arith.extui %448 : vector<5x1xi1> to vector<5x1xi32>
    %450 = arith.sitofp %449 : vector<5x1xi32> to vector<5x1xf32>
    %451 = vector.broadcast %450 : vector<5x1xf32> to vector<5x128xf32>
    %452 = vector.broadcast %444 : vector<1x128xf32> to vector<5x128xf32>
    %453 = arith.mulf %451, %452 : vector<5x128xf32>
    %454 = arith.addf %431, %453 : vector<5x128xf32>
    %455 = vector.broadcast %450 : vector<5x1xf32> to vector<5x128xf32>
    %456 = vector.broadcast %446 : vector<1x128xf32> to vector<5x128xf32>
    %457 = arith.mulf %455, %456 : vector<5x128xf32>
    %458 = arith.addf %435, %457 : vector<5x128xf32>
    %459 = arith.addf %436, %450 : vector<5x1xf32>
    %c19_i32 = arith.constant 19 : i32
    %460 = arith.index_cast %c19_i32 : i32 to index
    %461 = memref.load %arg6[%460] : memref<20xi32, #tpu.memory_space<smem>>
    %462 = arith.index_cast %c19_i32 : i32 to index
    %463 = memref.load %arg7[%462] : memref<20xi32, #tpu.memory_space<smem>>
    %464 = arith.index_cast %c19_i32 : i32 to index
    %465 = memref.load %arg8[%464] : memref<20xi32, #tpu.memory_space<smem>>
    %466 = arith.index_cast %461 : i32 to index
    %c0_57 = arith.constant 0 : index
    %467 = vector.load %arg26[%466, %c0_57] : memref<12x128xf32, #tpu.memory_space<vmem>>, vector<1x128xf32>
    %468 = arith.index_cast %463 : i32 to index
    %c0_58 = arith.constant 0 : index
    %469 = vector.load %arg26[%468, %c0_58] : memref<12x128xf32, #tpu.memory_space<vmem>>, vector<1x128xf32>
    %470 = vector.broadcast %465 : i32 to vector<5x1xi32>
    %471 = arith.cmpi eq, %20, %470 : vector<5x1xi32>
    %472 = arith.extui %471 : vector<5x1xi1> to vector<5x1xi32>
    %473 = arith.sitofp %472 : vector<5x1xi32> to vector<5x1xf32>
    %474 = vector.broadcast %473 : vector<5x1xf32> to vector<5x128xf32>
    %475 = vector.broadcast %467 : vector<1x128xf32> to vector<5x128xf32>
    %476 = arith.mulf %474, %475 : vector<5x128xf32>
    %477 = arith.addf %454, %476 : vector<5x128xf32>
    %478 = vector.broadcast %473 : vector<5x1xf32> to vector<5x128xf32>
    %479 = vector.broadcast %469 : vector<1x128xf32> to vector<5x128xf32>
    %480 = arith.mulf %478, %479 : vector<5x128xf32>
    %481 = arith.addf %458, %480 : vector<5x128xf32>
    %482 = arith.addf %459, %473 : vector<5x1xf32>
    %c20_i32 = arith.constant 20 : i32
    %cst_59 = arith.constant 1.000000e+00 : f32
    %483 = vector.broadcast %cst_59 : f32 to vector<5x1xf32>
    %484 = arith.divf %483, %482 : vector<5x1xf32>
    %485 = vector.broadcast %484 : vector<5x1xf32> to vector<5x128xf32>
    %486 = arith.mulf %477, %485 : vector<5x128xf32>
    %487 = vector.broadcast %484 : vector<5x1xf32> to vector<5x128xf32>
    %488 = arith.mulf %481, %487 : vector<5x128xf32>
    %489 = arith.truncf %486 : vector<5x128xf32> to vector<5x128xbf16>
    %c0_60 = arith.constant 0 : index
    %c0_61 = arith.constant 0 : index
    %490 = vector.load %arg11[%c0_60, %c0_61] : memref<128x128xbf16, #tpu.memory_space<vmem>>, vector<128x128xbf16>
    %cst_62 = arith.constant dense<0.000000e+00> : vector<5x128xf32>
    %491 = tpu.matmul %489, %490, %cst_62 {dimension_numbers = #tpu.dot_dimension_numbers<[1], [0], [0], [1], [0, 0, 1, 1], [], []>} : vector<5x128xbf16>, vector<128x128xbf16>, vector<5x128xf32> -> vector<5x128xf32>
    %492 = arith.truncf %488 : vector<5x128xf32> to vector<5x128xbf16>
    %c0_63 = arith.constant 0 : index
    %c0_64 = arith.constant 0 : index
    %493 = vector.load %arg12[%c0_63, %c0_64] : memref<128x128xbf16, #tpu.memory_space<vmem>>, vector<128x128xbf16>
    %cst_65 = arith.constant dense<0.000000e+00> : vector<5x128xf32>
    %494 = tpu.matmul %492, %493, %cst_65 {dimension_numbers = #tpu.dot_dimension_numbers<[1], [0], [0], [1], [0, 0, 1, 1], [], []>} : vector<5x128xbf16>, vector<128x128xbf16>, vector<5x128xf32> -> vector<5x128xf32>
    %495 = arith.addf %491, %494 : vector<5x128xf32>
    %c0_66 = arith.constant 0 : index
    %c0_67 = arith.constant 0 : index
    %496 = vector.load %arg13[%c0_66, %c0_67] : memref<1x128xf32, #tpu.memory_space<vmem>>, vector<1x128xf32>
    %497 = vector.broadcast %496 : vector<1x128xf32> to vector<5x128xf32>
    %498 = arith.addf %495, %497 : vector<5x128xf32>
    %499 = arith.truncf %498 : vector<5x128xf32> to vector<5x128xbf16>
    %c0_68 = arith.constant 0 : index
    %c0_69 = arith.constant 0 : index
    %500 = vector.load %arg14[%c0_68, %c0_69] : memref<128x128xbf16, #tpu.memory_space<vmem>>, vector<128x128xbf16>
    %cst_70 = arith.constant dense<0.000000e+00> : vector<5x128xf32>
    %501 = tpu.matmul %499, %500, %cst_70 {dimension_numbers = #tpu.dot_dimension_numbers<[1], [0], [0], [1], [0, 0, 1, 1], [], []>} : vector<5x128xbf16>, vector<128x128xbf16>, vector<5x128xf32> -> vector<5x128xf32>
    %c0_71 = arith.constant 0 : index
    %c0_72 = arith.constant 0 : index
    %502 = vector.load %arg15[%c0_71, %c0_72] : memref<1x128xf32, #tpu.memory_space<vmem>>, vector<1x128xf32>
    %503 = vector.broadcast %502 : vector<1x128xf32> to vector<5x128xf32>
    %504 = arith.addf %501, %503 : vector<5x128xf32>
    %c0_73 = arith.constant 0 : index
    %c0_74 = arith.constant 0 : index
    %505 = vector.load %arg9[%c0_73, %c0_74] : memref<5x1xi32, #tpu.memory_space<vmem>>, vector<5x1xi32>
    %c0_i32_75 = arith.constant 0 : i32
    %506 = vector.broadcast %c0_i32_75 : i32 to vector<5x1xi32>
    %507 = arith.cmpi ne, %505, %506 : vector<5x1xi32>
    %c0_76 = arith.constant 0 : index
    %c0_77 = arith.constant 0 : index
    %508 = vector.load %arg10[%c0_76, %c0_77] : memref<5x128xf32, #tpu.memory_space<vmem>>, vector<5x128xf32>
    %509 = vector.shape_cast %507 : vector<5x1xi1> to vector<5x1xi1>
    %510 = vector.broadcast %509 : vector<5x1xi1> to vector<5x128xi1>
    %511 = arith.select %510, %504, %508 : vector<5x128xi1>, vector<5x128xf32>
    %512 = arith.truncf %511 : vector<5x128xf32> to vector<5x128xbf16>
    %c0_78 = arith.constant 0 : index
    %c0_79 = arith.constant 0 : index
    %513 = vector.load %arg16[%c0_78, %c0_79] : memref<128x128xbf16, #tpu.memory_space<vmem>>, vector<128x128xbf16>
    %cst_80 = arith.constant dense<0.000000e+00> : vector<5x128xf32>
    %514 = tpu.matmul %512, %513, %cst_80 {dimension_numbers = #tpu.dot_dimension_numbers<[1], [0], [0], [1], [0, 0, 1, 1], [], []>} : vector<5x128xbf16>, vector<128x128xbf16>, vector<5x128xf32> -> vector<5x128xf32>
    %c0_81 = arith.constant 0 : index
    %c0_82 = arith.constant 0 : index
    %515 = vector.load %arg17[%c0_81, %c0_82] : memref<1x128xf32, #tpu.memory_space<vmem>>, vector<1x128xf32>
    %516 = vector.broadcast %515 : vector<1x128xf32> to vector<5x128xf32>
    %517 = arith.addf %514, %516 : vector<5x128xf32>
    %c0_83 = arith.constant 0 : index
    %c0_84 = arith.constant 0 : index
    %518 = vector.load %arg18[%c0_83, %c0_84] : memref<6x128xbf16, #tpu.memory_space<vmem>>, vector<6x128xbf16>
    %c0_85 = arith.constant 0 : index
    %c0_86 = arith.constant 0 : index
    %519 = vector.load %arg19[%c0_85, %c0_86] : memref<128x128xbf16, #tpu.memory_space<vmem>>, vector<128x128xbf16>
    %cst_87 = arith.constant dense<0.000000e+00> : vector<6x128xf32>
    %520 = tpu.matmul %518, %519, %cst_87 {dimension_numbers = #tpu.dot_dimension_numbers<[1], [0], [0], [1], [0, 0, 1, 1], [], []>} : vector<6x128xbf16>, vector<128x128xbf16>, vector<6x128xf32> -> vector<6x128xf32>
    %c0_88 = arith.constant 0 : index
    %c0_89 = arith.constant 0 : index
    %521 = vector.load %arg20[%c0_88, %c0_89] : memref<1x128xf32, #tpu.memory_space<vmem>>, vector<1x128xf32>
    %522 = vector.broadcast %521 : vector<1x128xf32> to vector<6x128xf32>
    %523 = arith.addf %520, %522 : vector<6x128xf32>
    %524 = arith.truncf %523 : vector<6x128xf32> to vector<6x128xbf16>
    %c0_90 = arith.constant 0 : index
    %c0_91 = arith.constant 0 : index
    %525 = vector.load %arg21[%c0_90, %c0_91] : memref<128x128xbf16, #tpu.memory_space<vmem>>, vector<128x128xbf16>
    %cst_92 = arith.constant dense<0.000000e+00> : vector<6x128xf32>
    %526 = tpu.matmul %524, %525, %cst_92 {dimension_numbers = #tpu.dot_dimension_numbers<[1], [0], [0], [1], [0, 0, 1, 1], [], []>} : vector<6x128xbf16>, vector<128x128xbf16>, vector<6x128xf32> -> vector<6x128xf32>
    %c0_93 = arith.constant 0 : index
    %c0_94 = arith.constant 0 : index
    %527 = vector.load %arg22[%c0_93, %c0_94] : memref<1x128xf32, #tpu.memory_space<vmem>>, vector<1x128xf32>
    %528 = vector.broadcast %527 : vector<1x128xf32> to vector<6x128xf32>
    %529 = arith.addf %526, %528 : vector<6x128xf32>
    %530 = arith.mulf %18, %18 : vector<12x128xf32>
    %cst_95 = arith.constant dense<0.000000e+00> : vector<12xf32>
    %531 = vector.multi_reduction <add>, %530, %cst_95 [1] : vector<12x128xf32> to vector<12xf32>
    %532 = vector.shape_cast %531 : vector<12xf32> to vector<12x1xf32>
    %cst_96 = arith.constant 1.000000e-24 : f32
    %533 = vector.broadcast %cst_96 : f32 to vector<12x1xf32>
    %534 = arith.maximumf %532, %533 : vector<12x1xf32>
    %535 = math.rsqrt %534 : vector<12x1xf32>
    %536 = vector.broadcast %535 : vector<12x1xf32> to vector<12x128xf32>
    %537 = arith.mulf %18, %536 : vector<12x128xf32>
    %c0_97 = arith.constant 0 : index
    %c0_98 = arith.constant 0 : index
    %538 = vector.load %arg23[%c0_97, %c0_98] : memref<12x128xf32, #tpu.memory_space<vmem>>, vector<12x128xf32>
    tpu.vector_store %arg23[%c0_97, %c0_98], %537 {strides = array<i32>} : memref<12x128xf32, #tpu.memory_space<vmem>>, vector<12x128xf32>,
    %539 = arith.mulf %517, %517 : vector<5x128xf32>
    %cst_99 = arith.constant dense<0.000000e+00> : vector<5xf32>
    %540 = vector.multi_reduction <add>, %539, %cst_99 [1] : vector<5x128xf32> to vector<5xf32>
    %541 = vector.shape_cast %540 : vector<5xf32> to vector<5x1xf32>
    %cst_100 = arith.constant 1.000000e-24 : f32
    %542 = vector.broadcast %cst_100 : f32 to vector<5x1xf32>
    %543 = arith.maximumf %541, %542 : vector<5x1xf32>
    %544 = math.rsqrt %543 : vector<5x1xf32>
    %545 = vector.broadcast %544 : vector<5x1xf32> to vector<5x128xf32>
    %546 = arith.mulf %517, %545 : vector<5x128xf32>
    %c0_101 = arith.constant 0 : index
    %c0_102 = arith.constant 0 : index
    %547 = vector.load %arg24[%c0_101, %c0_102] : memref<5x128xf32, #tpu.memory_space<vmem>>, vector<5x128xf32>
    tpu.vector_store %arg24[%c0_101, %c0_102], %546 {strides = array<i32>} : memref<5x128xf32, #tpu.memory_space<vmem>>, vector<5x128xf32>,
    %548 = arith.mulf %529, %529 : vector<6x128xf32>
    %cst_103 = arith.constant dense<0.000000e+00> : vector<6xf32>
    %549 = vector.multi_reduction <add>, %548, %cst_103 [1] : vector<6x128xf32> to vector<6xf32>
    %550 = vector.shape_cast %549 : vector<6xf32> to vector<6x1xf32>
    %cst_104 = arith.constant 1.000000e-24 : f32
    %551 = vector.broadcast %cst_104 : f32 to vector<6x1xf32>
    %552 = arith.maximumf %550, %551 : vector<6x1xf32>
    %553 = math.rsqrt %552 : vector<6x1xf32>
    %554 = vector.broadcast %553 : vector<6x1xf32> to vector<6x128xf32>
    %555 = arith.mulf %529, %554 : vector<6x128xf32>
    %c0_105 = arith.constant 0 : index
    %c0_106 = arith.constant 0 : index
    %556 = vector.load %arg25[%c0_105, %c0_106] : memref<6x128xf32, #tpu.memory_space<vmem>>, vector<6x128xf32>
    tpu.vector_store %arg25[%c0_105, %c0_106], %555 {strides = array<i32>} : memref<6x128xf32, #tpu.memory_space<vmem>>, vector<6x128xf32>,
    return
  }
}

</mosaic_0001>

<llo_original>
// kernel: gcn_forward.1
$region0: #{gcn_forward.1}
  #allocation0 [shape = 'u32[]', space=smem, size = 0x4, offset = 0x4, fixed_abs, tag = 'smem constant byte address 0x4 - core index']
  #allocation1 [shape = 'u32[144,128]{1,0:T(1,128)}', space=vmem, size = 0x12000, scoped, tag = 'internal scratch']
  #allocation2 [shape = 'f32[12,128]{1,0:T(8,128)}', space=vmem, size = 0x2000, scoped, tag = 'scratch operand']
  %s0 = inlined_call_operand.vmem [shape: bf16[12,12], index: 0, kind: input, shape index: {}]
  %s1 = inlined_call_operand.vmem [shape: bf16[12,128], index: 1, kind: input, shape index: {}]
  %s2 = inlined_call_operand.vmem [shape: bf16[128,128], index: 2, kind: input, shape index: {}]
  %s3 = inlined_call_operand.vmem [shape: f32[1,128], index: 3, kind: input, shape index: {}]
  %s4 = inlined_call_operand.vmem [shape: bf16[128,128], index: 4, kind: input, shape index: {}]
  %s5 = inlined_call_operand.vmem [shape: f32[1,128], index: 5, kind: input, shape index: {}]
  %s6 = inlined_call_operand.vmem [shape: s32[20], index: 6, kind: input, shape index: {}]
  %s7 = inlined_call_operand.vmem [shape: s32[20], index: 7, kind: input, shape index: {}]
  %s8 = inlined_call_operand.vmem [shape: s32[20], index: 8, kind: input, shape index: {}]
  %s9 = inlined_call_operand.vmem [shape: s32[5,1], index: 9, kind: input, shape index: {}]
  %s10 = inlined_call_operand.vmem [shape: f32[5,128], index: 10, kind: input, shape index: {}, may-alias: {10,24}]
  %s11 = inlined_call_operand.vmem [shape: bf16[128,128], index: 11, kind: input, shape index: {}]
  %s12 = inlined_call_operand.vmem [shape: bf16[128,128], index: 12, kind: input, shape index: {}]
  %s13 = inlined_call_operand.vmem [shape: f32[1,128], index: 13, kind: input, shape index: {}]
  %s14 = inlined_call_operand.vmem [shape: bf16[128,128], index: 14, kind: input, shape index: {}]
  %s15 = inlined_call_operand.vmem [shape: f32[1,128], index: 15, kind: input, shape index: {}]
  %s16 = inlined_call_operand.vmem [shape: bf16[128,128], index: 16, kind: input, shape index: {}]
  %s17 = inlined_call_operand.vmem [shape: f32[1,128], index: 17, kind: input, shape index: {}]
  %s18 = inlined_call_operand.vmem [shape: bf16[6,128], index: 18, kind: input, shape index: {}]
  %s19 = inlined_call_operand.vmem [shape: bf16[128,128], index: 19, kind: input, shape index: {}]
  %s20 = inlined_call_operand.vmem [shape: f32[1,128], index: 20, kind: input, shape index: {}]
  %s21 = inlined_call_operand.vmem [shape: bf16[128,128], index: 21, kind: input, shape index: {}]
  %s22 = inlined_call_operand.vmem [shape: f32[1,128], index: 22, kind: input, shape index: {}]
  %s23 = inlined_call_operand.hbm [shape: f32[12,128], index: 23, kind: output, shape index: {0}]
  %s24 = inlined_call_operand.vmem [shape: f32[5,128], index: 24, kind: output, shape index: {1}, may-alias: {10,24}]
  %s25 = inlined_call_operand.hbm [shape: f32[6,128], index: 25, kind: output, shape index: {2}]
  %26 = xla_tuple %s23, %s24, %s25
  %s27 = sld [smem:[#allocation0]]
  $region130: #{gcn_forward.1} parent=0
    _
  %s29 = ssub.s32 1, %s27
  %s30 = scalar_select 0, %s29, %s27
  $region1: #{gcn_forward.1} parent=0
    #allocation3 [shape = 'u8[512]{0}', space=smem, size = 0x200, scoped, tag = 'input window, operand 6, single buffered']
    #allocation4 [shape = 's32[1]{0}', space=sflag, size = 0x4, scoped, tag = 'scoped memory for gcn_forward.1']
    #allocation5 [shape = 's32[1]{0}', space=sflag, size = 0x4, scoped, tag = 'scoped memory for gcn_forward.1']
    #allocation6 [shape = 'u8[512]{0}', space=smem, size = 0x200, scoped, tag = 'input window, operand 7, single buffered']
    #allocation7 [shape = 's32[1]{0}', space=sflag, size = 0x4, scoped, tag = 'scoped memory for gcn_forward.1']
    #allocation8 [shape = 'u8[512]{0}', space=smem, size = 0x200, scoped, tag = 'input window, operand 8, single buffered']
    #allocation9 [shape = 'u8[8192]{0}', space=vmem, size = 0x2000, scoped, tag = 'output window, operand 0, single buffered']
    #allocation10 [shape = 'u8[4096]{0}', space=vmem, size = 0x1000, scoped, tag = 'output window, operand 2, single buffered']
    #allocation11 [shape = 's32[1]{0}', space=sflag, size = 0x4, scoped, tag = 'scoped memory for gcn_forward.1']
    %31 = vsyncpa [#allocation5], 0
    %32 = vsyncpa [#allocation7], 0
    %33 = vsyncpa [#allocation4], 0
    %34 = vsyncpa [#allocation11], 0
    // Predicated region
    $region2: #{gcn_forward.1} parent=1 // pred_check
      _
    $region3: #{gcn_forward.1} parent=1 // pred_check_branch
      %36 = sbr.rel (0) target = $region5
    $region4: #{gcn_forward.1} parent=1 // pred_region
      _
    $region5: #{gcn_forward.1} parent=1 // pred_fallthru
      _
    // Predicated region
    $region6: #{gcn_forward.1} parent=1 // pred_check
      _
    $region7: #{gcn_forward.1} parent=1 // pred_check_branch
      %38 = sbr.rel (0) target = $region9
    $region8: #{gcn_forward.1} parent=1 // pred_region
      _
    $region9: #{gcn_forward.1} parent=1 // pred_fallthru
      _
    // Predicated region
    $region10: #{gcn_forward.1} parent=1 // pred_check
      _
    $region11: #{gcn_forward.1} parent=1 // pred_check_branch
      %40 = sbr.rel (0) target = $region13
    $region12: #{gcn_forward.1} parent=1 // pred_region
      _
    $region13: #{gcn_forward.1} parent=1 // pred_fallthru
      _
    // Predicated region
    $region14: #{gcn_forward.1} parent=1 // pred_check
      _
    $region15: #{gcn_forward.1} parent=1 // pred_check_branch
      %42 = sbr.rel (0) target = $region17
    $region16: #{gcn_forward.1} parent=1 // pred_region
      _
    $region17: #{gcn_forward.1} parent=1 // pred_fallthru
      _
    // Predicated region
    $region18: #{gcn_forward.1} parent=1 // pred_check
      _
    $region19: #{gcn_forward.1} parent=1 // pred_check_branch
      %44 = sbr.rel (0) target = $region21
    $region20: #{gcn_forward.1} parent=1 // pred_region
      _
    $region21: #{gcn_forward.1} parent=1 // pred_fallthru
      _
    // Predicated region
    $region22: #{gcn_forward.1} parent=1 // pred_check
      _
    $region23: #{gcn_forward.1} parent=1 // pred_check_branch
      %46 = sbr.rel (0) target = $region25
    $region24: #{gcn_forward.1} parent=1 // pred_region
      _
    $region25: #{gcn_forward.1} parent=1 // pred_fallthru
      _
    // Predicated region
    $region26: #{gcn_forward.1} parent=1 // pred_check
      _
    $region27: #{gcn_forward.1} parent=1 // pred_check_branch
      %48 = sbr.rel (0) target = $region29
    $region28: #{gcn_forward.1} parent=1 // pred_region
      %s50 = ssub.s32 16, 16
      %51 = vsyncadd [#allocation5], %s50
      %s53 = sshll.u32 %s6, 4
      %s54 = int_to_ptr.vmem [resolvable:$true] %s53
      %56 = dma.vmem_to_smem %s54, 16, [#allocation3], [#allocation5]
    $region29: #{gcn_forward.1} parent=1 // pred_fallthru
      _
    // Predicated region
    $region30: #{gcn_forward.1} parent=1 // pred_check
      _
    $region31: #{gcn_forward.1} parent=1 // pred_check_branch
      %58 = sbr.rel (0) target = $region33
    $region32: #{gcn_forward.1} parent=1 // pred_region
      %s60 = ssub.s32 16, 16
      %61 = vsyncadd [#allocation7], %s60
      %s63 = sshll.u32 %s7, 4
      %s64 = int_to_ptr.vmem [resolvable:$true] %s63
      %66 = dma.vmem_to_smem %s64, 16, [#allocation6], [#allocation7]
    $region33: #{gcn_forward.1} parent=1 // pred_fallthru
      _
    // Predicated region
    $region34: #{gcn_forward.1} parent=1 // pred_check
      _
    $region35: #{gcn_forward.1} parent=1 // pred_check_branch
      %68 = sbr.rel (0) target = $region37
    $region36: #{gcn_forward.1} parent=1 // pred_region
      %s70 = ssub.s32 16, 16
      %71 = vsyncadd [#allocation7], %s70
      %s73 = sshll.u32 %s8, 4
      %s74 = int_to_ptr.vmem [resolvable:$true] %s73
      %76 = dma.vmem_to_smem %s74, 16, [#allocation8], [#allocation7]
    $region37: #{gcn_forward.1} parent=1 // pred_fallthru
      _
    // Predicated region
    $region38: #{gcn_forward.1} parent=1 // pred_check
      _
    $region39: #{gcn_forward.1} parent=1 // pred_check_branch
      %78 = sbr.rel (0) target = $region41
    $region40: #{gcn_forward.1} parent=1 // pred_region
      _
    $region41: #{gcn_forward.1} parent=1 // pred_fallthru
      _
    // Predicated region
    $region42: #{gcn_forward.1} parent=1 // pred_check
      _
    $region43: #{gcn_forward.1} parent=1 // pred_check_branch
      %80 = sbr.rel (0) target = $region45
    $region44: #{gcn_forward.1} parent=1 // pred_region
      _
    $region45: #{gcn_forward.1} parent=1 // pred_fallthru
      _
    // Predicated region
    $region46: #{gcn_forward.1} parent=1 // pred_check
      _
    $region47: #{gcn_forward.1} parent=1 // pred_check_branch
      %82 = sbr.rel (0) target = $region49
    $region48: #{gcn_forward.1} parent=1 // pred_region
      _
    $region49: #{gcn_forward.1} parent=1 // pred_fallthru
      _
    // Predicated region
    $region50: #{gcn_forward.1} parent=1 // pred_check
      _
    $region51: #{gcn_forward.1} parent=1 // pred_check_branch
      %84 = sbr.rel (0) target = $region53
    $region52: #{gcn_forward.1} parent=1 // pred_region
      _
    $region53: #{gcn_forward.1} parent=1 // pred_fallthru
      _
    // Predicated region
    $region54: #{gcn_forward.1} parent=1 // pred_check
      _
    $region55: #{gcn_forward.1} parent=1 // pred_check_branch
      %86 = sbr.rel (0) target = $region57
    $region56: #{gcn_forward.1} parent=1 // pred_region
      _
    $region57: #{gcn_forward.1} parent=1 // pred_fallthru
      _
    // Predicated region
    $region58: #{gcn_forward.1} parent=1 // pred_check
      _
    $region59: #{gcn_forward.1} parent=1 // pred_check_branch
      %88 = sbr.rel (0) target = $region61
    $region60: #{gcn_forward.1} parent=1 // pred_region
      _
    $region61: #{gcn_forward.1} parent=1 // pred_fallthru
      _
    // Predicated region
    $region62: #{gcn_forward.1} parent=1 // pred_check
      _
    $region63: #{gcn_forward.1} parent=1 // pred_check_branch
      %90 = sbr.rel (0) target = $region65
    $region64: #{gcn_forward.1} parent=1 // pred_region
      _
    $region65: #{gcn_forward.1} parent=1 // pred_fallthru
      _
    // Predicated region
    $region66: #{gcn_forward.1} parent=1 // pred_check
      _
    $region67: #{gcn_forward.1} parent=1 // pred_check_branch
      %92 = sbr.rel (0) target = $region69
    $region68: #{gcn_forward.1} parent=1 // pred_region
      _
    $region69: #{gcn_forward.1} parent=1 // pred_fallthru
      _
    // Predicated region
    $region70: #{gcn_forward.1} parent=1 // pred_check
      _
    $region71: #{gcn_forward.1} parent=1 // pred_check_branch
      %94 = sbr.rel (0) target = $region73
    $region72: #{gcn_forward.1} parent=1 // pred_region
      _
    $region73: #{gcn_forward.1} parent=1 // pred_fallthru
      _
    // Predicated region
    $region74: #{gcn_forward.1} parent=1 // pred_check
      _
    $region75: #{gcn_forward.1} parent=1 // pred_check_branch
      %96 = sbr.rel (0) target = $region77
    $region76: #{gcn_forward.1} parent=1 // pred_region
      _
    $region77: #{gcn_forward.1} parent=1 // pred_fallthru
      _
    // Predicated region
    $region78: #{gcn_forward.1} parent=1 // pred_check
      _
    $region79: #{gcn_forward.1} parent=1 // pred_check_branch
      %98 = sbr.rel (0) target = $region81
    $region80: #{gcn_forward.1} parent=1 // pred_region
      _
    $region81: #{gcn_forward.1} parent=1 // pred_fallthru
      _
    // Predicated region
    $region82: #{gcn_forward.1} parent=1 // pred_check
      _
    $region83: #{gcn_forward.1} parent=1 // pred_check_branch
      %100 = sbr.rel (0) target = $region85
    $region84: #{gcn_forward.1} parent=1 // pred_region
      _
    $region85: #{gcn_forward.1} parent=1 // pred_fallthru
      _
    // Predicated region
    $region86: #{gcn_forward.1} parent=1 // pred_check
      _
    $region87: #{gcn_forward.1} parent=1 // pred_check_branch
      %102 = sbr.rel (0) target = $region89
    $region88: #{gcn_forward.1} parent=1 // pred_region
      _
    $region89: #{gcn_forward.1} parent=1 // pred_fallthru
      _
    // Predicated region
    $region90: #{gcn_forward.1} parent=1 // pred_check
      _
    $region91: #{gcn_forward.1} parent=1 // pred_check_branch
      %104 = sbr.rel (0) target = $region93
    $region92: #{gcn_forward.1} parent=1 // pred_region
      _
    $region93: #{gcn_forward.1} parent=1 // pred_fallthru
      _
    // Predicated region
    $region94: #{gcn_forward.1} parent=1 // pred_check
      _
    $region95: #{gcn_forward.1} parent=1 // pred_check_branch
      %106 = sbr.rel (0) target = $region97
    $region96: #{gcn_forward.1} parent=1 // pred_region
      %107 = dma.done [#allocation5], 16
    $region97: #{gcn_forward.1} parent=1 // pred_fallthru
      _
    // Predicated region
    $region98: #{gcn_forward.1} parent=1 // pred_check
      _
    $region99: #{gcn_forward.1} parent=1 // pred_check_branch
      %109 = sbr.rel (0) target = $region101
    $region100: #{gcn_forward.1} parent=1 // pred_region
      %110 = dma.done [#allocation7], 16
    $region101: #{gcn_forward.1} parent=1 // pred_fallthru
      _
    // Predicated region
    $region102: #{gcn_forward.1} parent=1 // pred_check
      _
    $region103: #{gcn_forward.1} parent=1 // pred_check_branch
      %112 = sbr.rel (0) target = $region105
    $region104: #{gcn_forward.1} parent=1 // pred_region
      %113 = dma.done [#allocation7], 16
    $region105: #{gcn_forward.1} parent=1 // pred_fallthru
      _
    %114 = sfence
    %v116 = vld [vmem:[%s0] sm:$0xf]
    %v117 = vld [vmem:[%s0 + $0x4] sm:$0x3]
    %v118 = vld [vmem:[%s1] sm:$0xf]
    %v119 = vld [vmem:[%s1 + $0x4] sm:$0x3]
    %v120 = vld [vmem:[%s2] sm:$0xf]
    %v121 = vld [vmem:[%s2 + $0x4] sm:$0xf]
    %v122 = vld [vmem:[%s2 + $0x8] sm:$0xf]
    %v123 = vld [vmem:[%s2 + $0xc] sm:$0xf]
    %v124 = vld [vmem:[%s2 + $0x10] sm:$0xf]
    %v125 = vld [vmem:[%s2 + $0x14] sm:$0xf]
    %v126 = vld [vmem:[%s2 + $0x18] sm:$0xf]
    %v127 = vld [vmem:[%s2 + $0x1c] sm:$0xf]
    %v128 = vld [vmem:[%s2 + $0x20] sm:$0xf]
    %v129 = vld [vmem:[%s2 + $0x24] sm:$0xf]
    %v130 = vld [vmem:[%s2 + $0x28] sm:$0xf]
    %v131 = vld [vmem:[%s2 + $0x2c] sm:$0xf]
    %v132 = vld [vmem:[%s2 + $0x30] sm:$0xf]
    %v133 = vld [vmem:[%s2 + $0x34] sm:$0xf]
    %v134 = vld [vmem:[%s2 + $0x38] sm:$0xf]
    %v135 = vld [vmem:[%s2 + $0x3c] sm:$0xf]
    %v138 = vunpack.c.l.b16 %v118
    %v139 = vunpack.c.l.b16 %v119
    %v140 = vpack.c.b16 %v139, %v138
    %v158 = vunpack.c.l.b16 %v120
    %v159 = vunpack.c.l.b16 %v121
    %v160 = vunpack.c.l.b16 %v122
    %v161 = vunpack.c.l.b16 %v123
    %v162 = vunpack.c.l.b16 %v124
    %v163 = vunpack.c.l.b16 %v125
    %v164 = vunpack.c.l.b16 %v126
    %v165 = vunpack.c.l.b16 %v127
    %v166 = vunpack.c.l.b16 %v128
    %v167 = vunpack.c.l.b16 %v129
    %v168 = vunpack.c.l.b16 %v130
    %v169 = vunpack.c.l.b16 %v131
    %v170 = vunpack.c.l.b16 %v132
    %v171 = vunpack.c.l.b16 %v133
    %v172 = vunpack.c.l.b16 %v134
    %v173 = vunpack.c.l.b16 %v135
    %v174 = vpack.c.b16 %v159, %v158
    %v175 = vpack.c.b16 %v161, %v160
    %v176 = vpack.c.b16 %v163, %v162
    %v177 = vpack.c.b16 %v165, %v164
    %v178 = vpack.c.b16 %v167, %v166
    %v179 = vpack.c.b16 %v169, %v168
    %v180 = vpack.c.b16 %v171, %v170
    %v181 = vpack.c.b16 %v173, %v172
    %190 = vmatprep.subr.bf16.mxu0 0
    %191 = vmatpush1.bf16.msra.mxu0 %v174
    %192 = vmatprep.subr.bf16.mxu0 0
    %193 = vmatpush1.bf16.msra.mxu0 %v175
    %194 = vmatprep.subr.bf16.mxu0 0
    %195 = vmatpush1.bf16.msra.mxu0 %v176
    %196 = vmatprep.subr.bf16.mxu0 0
    %197 = vmatpush1.bf16.msra.mxu0 %v177
    %198 = vmatprep.subr.bf16.mxu0 0
    %199 = vmatpush1.bf16.msra.mxu0 %v178
    %200 = vmatprep.subr.bf16.mxu0 0
    %201 = vmatpush1.bf16.msra.mxu0 %v179
    %202 = vmatprep.subr.bf16.mxu0 0
    %203 = vmatpush1.bf16.msra.mxu0 %v180
    %204 = vmatprep.subr.bf16.mxu0 0
    %205 = vmatpush1.bf16.msra.mxu0 %v181
    %206 = vmatprep.subr.bf16.mxu0 0
    %207 = vmatpush1.bf16.msra.mxu0 0
    %208 = vmatprep.subr.bf16.mxu0 0
    %209 = vmatpush1.bf16.msra.mxu0 0
    %210 = vmatprep.subr.bf16.mxu0 0
    %211 = vmatpush1.bf16.msra.mxu0 0
    %212 = vmatprep.subr.bf16.mxu0 0
    %213 = vmatpush1.bf16.msra.mxu0 0
    %214 = vmatprep.subr.bf16.mxu0 0
    %215 = vmatpush1.bf16.msra.mxu0 0
    %216 = vmatprep.subr.bf16.mxu0 0
    %217 = vmatpush1.bf16.msra.mxu0 0
    %218 = vmatprep.subr.bf16.mxu0 0
    %219 = vmatpush1.bf16.msra.mxu0 0
    %220 = vmatprep.subr.bf16.mxu0 0
    %221 = vmatpush1.bf16.msra.mxu0 0
    %222 = vmatprep.mubr.bf16.mxu0 0
    %223 = vmatmul.mubr.bf16.gmra.mrb[0].mxu0 %v140
    %v224 = vpop.f32.mrb[0].mxu0
    %v225 = vadd.f32 0.0, %v224
    %v226 = vpop.f32.mrb[0].mxu0
    %v227 = vpop.f32.mrb[0].mxu0
    %v228 = vadd.f32 0.0, %v227
    %v229 = vpop.f32.mrb[0].mxu0
    %230 = vdwg.mxu0
    %v231 = vpack.c.bf16 %v228, %v225
    %v232 = vld [vmem:[%s3] sm:$0x1]
    %v234 = vlaneseq
    %v235 = vshrl.u32 %v234, 7
    %v236 = vsub.s32 0, %v235
    %v237 = vrot.slane %v232, %v236
    %v241 = vunpack.c.l.b16 %v116
    %v242 = vunpack.c.l.b16 %v117
    %v243 = vpack.c.b16 %v242, %v241
    %vm244 = vcmask 97280
    %v246 = vsel %vm244, %v243, 0
    %vm248 = vcmask 1045504
    %v250 = vsel %vm248, %v231, 0
    %252 = vmatprep.subr.bf16.mxu0 0
    %253 = vmatpush1.bf16.msra.mxu0 %v250
    %254 = vmatprep.subr.bf16.mxu0 0
    %255 = vmatpush1.bf16.msra.mxu0 0
    %256 = vmatprep.subr.bf16.mxu0 0
    %257 = vmatpush1.bf16.msra.mxu0 0
    %258 = vmatprep.subr.bf16.mxu0 0
    %259 = vmatpush1.bf16.msra.mxu0 0
    %260 = vmatprep.subr.bf16.mxu0 0
    %261 = vmatpush1.bf16.msra.mxu0 0
    %262 = vmatprep.subr.bf16.mxu0 0
    %263 = vmatpush1.bf16.msra.mxu0 0
    %264 = vmatprep.subr.bf16.mxu0 0
    %265 = vmatpush1.bf16.msra.mxu0 0
    %266 = vmatprep.subr.bf16.mxu0 0
    %267 = vmatpush1.bf16.msra.mxu0 0
    %268 = vmatprep.subr.bf16.mxu0 0
    %269 = vmatpush1.bf16.msra.mxu0 0
    %270 = vmatprep.subr.bf16.mxu0 0
    %271 = vmatpush1.bf16.msra.mxu0 0
    %272 = vmatprep.subr.bf16.mxu0 0
    %273 = vmatpush1.bf16.msra.mxu0 0
    %274 = vmatprep.subr.bf16.mxu0 0
    %275 = vmatpush1.bf16.msra.mxu0 0
    %276 = vmatprep.subr.bf16.mxu0 0
    %277 = vmatpush1.bf16.msra.mxu0 0
    %278 = vmatprep.subr.bf16.mxu0 0
    %279 = vmatpush1.bf16.msra.mxu0 0
    %280 = vmatprep.subr.bf16.mxu0 0
    %281 = vmatpush1.bf16.msra.mxu0 0
    %282 = vmatprep.subr.bf16.mxu0 0
    %283 = vmatpush1.bf16.msra.mxu0 0
    %284 = vmatprep.mubr.bf16.mxu0 0
    %285 = vmatmul.mubr.bf16.gmra.mrb[0].mxu0 %v246
    %v286 = vpop.f32.mrb[0].mxu0
    %v287 = vadd.f32 %v237, %v286
    %v288 = vpop.f32.mrb[0].mxu0
    %v289 = vpop.f32.mrb[0].mxu0
    %v290 = vadd.f32 %v237, %v289
    %v291 = vpop.f32.mrb[0].mxu0
    %292 = vdwg.mxu0
    %v293 = vmax.f32 %v287, 0.0
    %v294 = vmax.f32 %v290, 0.0
    %v295 = vpack.c.bf16 %v294, %v293
    %v296 = vld [vmem:[%s4] sm:$0xf]
    %v297 = vld [vmem:[%s4 + $0x4] sm:$0xf]
    %v298 = vld [vmem:[%s4 + $0x8] sm:$0xf]
    %v299 = vld [vmem:[%s4 + $0xc] sm:$0xf]
    %v300 = vld [vmem:[%s4 + $0x10] sm:$0xf]
    %v301 = vld [vmem:[%s4 + $0x14] sm:$0xf]
    %v302 = vld [vmem:[%s4 + $0x18] sm:$0xf]
    %v303 = vld [vmem:[%s4 + $0x1c] sm:$0xf]
    %v304 = vld [vmem:[%s4 + $0x20] sm:$0xf]
    %v305 = vld [vmem:[%s4 + $0x24] sm:$0xf]
    %v306 = vld [vmem:[%s4 + $0x28] sm:$0xf]
    %v307 = vld [vmem:[%s4 + $0x2c] sm:$0xf]
    %v308 = vld [vmem:[%s4 + $0x30] sm:$0xf]
    %v309 = vld [vmem:[%s4 + $0x34] sm:$0xf]
    %v310 = vld [vmem:[%s4 + $0x38] sm:$0xf]
    %v311 = vld [vmem:[%s4 + $0x3c] sm:$0xf]
    %v328 = vunpack.c.l.b16 %v296
    %v329 = vunpack.c.l.b16 %v297
    %v330 = vunpack.c.l.b16 %v298
    %v331 = vunpack.c.l.b16 %v299
    %v332 = vunpack.c.l.b16 %v300
    %v333 = vunpack.c.l.b16 %v301
    %v334 = vunpack.c.l.b16 %v302
    %v335 = vunpack.c.l.b16 %v303
    %v336 = vunpack.c.l.b16 %v304
    %v337 = vunpack.c.l.b16 %v305
    %v338 = vunpack.c.l.b16 %v306
    %v339 = vunpack.c.l.b16 %v307
    %v340 = vunpack.c.l.b16 %v308
    %v341 = vunpack.c.l.b16 %v309
    %v342 = vunpack.c.l.b16 %v310
    %v343 = vunpack.c.l.b16 %v311
    %v344 = vpack.c.b16 %v329, %v328
    %v345 = vpack.c.b16 %v331, %v330
    %v346 = vpack.c.b16 %v333, %v332
    %v347 = vpack.c.b16 %v335, %v334
    %v348 = vpack.c.b16 %v337, %v336
    %v349 = vpack.c.b16 %v339, %v338
    %v350 = vpack.c.b16 %v341, %v340
    %v351 = vpack.c.b16 %v343, %v342
    %360 = vmatprep.subr.bf16.mxu0 0
    %361 = vmatpush1.bf16.msra.mxu0 %v344
    %362 = vmatprep.subr.bf16.mxu0 0
    %363 = vmatpush1.bf16.msra.mxu0 %v345
    %364 = vmatprep.subr.bf16.mxu0 0
    %365 = vmatpush1.bf16.msra.mxu0 %v346
    %366 = vmatprep.subr.bf16.mxu0 0
    %367 = vmatpush1.bf16.msra.mxu0 %v347
    %368 = vmatprep.subr.bf16.mxu0 0
    %369 = vmatpush1.bf16.msra.mxu0 %v348
    %370 = vmatprep.subr.bf16.mxu0 0
    %371 = vmatpush1.bf16.msra.mxu0 %v349
    %372 = vmatprep.subr.bf16.mxu0 0
    %373 = vmatpush1.bf16.msra.mxu0 %v350
    %374 = vmatprep.subr.bf16.mxu0 0
    %375 = vmatpush1.bf16.msra.mxu0 %v351
    %376 = vmatprep.subr.bf16.mxu0 0
    %377 = vmatpush1.bf16.msra.mxu0 0
    %378 = vmatprep.subr.bf16.mxu0 0
    %379 = vmatpush1.bf16.msra.mxu0 0
    %380 = vmatprep.subr.bf16.mxu0 0
    %381 = vmatpush1.bf16.msra.mxu0 0
    %382 = vmatprep.subr.bf16.mxu0 0
    %383 = vmatpush1.bf16.msra.mxu0 0
    %384 = vmatprep.subr.bf16.mxu0 0
    %385 = vmatpush1.bf16.msra.mxu0 0
    %386 = vmatprep.subr.bf16.mxu0 0
    %387 = vmatpush1.bf16.msra.mxu0 0
    %388 = vmatprep.subr.bf16.mxu0 0
    %389 = vmatpush1.bf16.msra.mxu0 0
    %390 = vmatprep.subr.bf16.mxu0 0
    %391 = vmatpush1.bf16.msra.mxu0 0
    %392 = vmatprep.mubr.bf16.mxu0 0
    %393 = vmatmul.mubr.bf16.gmra.mrb[0].mxu0 %v295
    %v394 = vpop.f32.mrb[0].mxu0
    %v395 = vadd.f32 0.0, %v394
    %v396 = vpop.f32.mrb[0].mxu0
    %v397 = vpop.f32.mrb[0].mxu0
    %v398 = vadd.f32 0.0, %v397
    %v399 = vpop.f32.mrb[0].mxu0
    %400 = vdwg.mxu0
    %v401 = vpack.c.bf16 %v398, %v395
    %v402 = vld [vmem:[%s5] sm:$0x1]
    %v404 = vlaneseq
    %v405 = vshrl.u32 %v404, 7
    %v406 = vsub.s32 0, %v405
    %v407 = vrot.slane %v402, %v406
    %v410 = vsel %vm248, %v401, 0
    %412 = vmatprep.subr.bf16.mxu0 0
    %413 = vmatpush1.bf16.msra.mxu0 %v410
    %414 = vmatprep.subr.bf16.mxu0 0
    %415 = vmatpush1.bf16.msra.mxu0 0
    %416 = vmatprep.subr.bf16.mxu0 0
    %417 = vmatpush1.bf16.msra.mxu0 0
    %418 = vmatprep.subr.bf16.mxu0 0
    %419 = vmatpush1.bf16.msra.mxu0 0
    %420 = vmatprep.subr.bf16.mxu0 0
    %421 = vmatpush1.bf16.msra.mxu0 0
    %422 = vmatprep.subr.bf16.mxu0 0
    %423 = vmatpush1.bf16.msra.mxu0 0
    %424 = vmatprep.subr.bf16.mxu0 0
    %425 = vmatpush1.bf16.msra.mxu0 0
    %426 = vmatprep.subr.bf16.mxu0 0
    %427 = vmatpush1.bf16.msra.mxu0 0
    %428 = vmatprep.subr.bf16.mxu0 0
    %429 = vmatpush1.bf16.msra.mxu0 0
    %430 = vmatprep.subr.bf16.mxu0 0
    %431 = vmatpush1.bf16.msra.mxu0 0
    %432 = vmatprep.subr.bf16.mxu0 0
    %433 = vmatpush1.bf16.msra.mxu0 0
    %434 = vmatprep.subr.bf16.mxu0 0
    %435 = vmatpush1.bf16.msra.mxu0 0
    %436 = vmatprep.subr.bf16.mxu0 0
    %437 = vmatpush1.bf16.msra.mxu0 0
    %438 = vmatprep.subr.bf16.mxu0 0
    %439 = vmatpush1.bf16.msra.mxu0 0
    %440 = vmatprep.subr.bf16.mxu0 0
    %441 = vmatpush1.bf16.msra.mxu0 0
    %442 = vmatprep.subr.bf16.mxu0 0
    %443 = vmatpush1.bf16.msra.mxu0 0
    %444 = vmatprep.mubr.bf16.mxu0 0
    %445 = vmatmul.mubr.bf16.gmra.mrb[0].mxu0 %v246
    %v446 = vpop.f32.mrb[0].mxu0
    %v447 = vadd.f32 %v407, %v446
    %v448 = vpop.f32.mrb[0].mxu0
    %v449 = vpop.f32.mrb[0].mxu0
    %v450 = vadd.f32 %v407, %v449
    %v451 = vpop.f32.mrb[0].mxu0
    %452 = vdwg.mxu0
    %453 = vst [vmem:[#allocation2] sm:$0xff] %v447
    %454 = vst [vmem:[#allocation2 + $0x8] sm:$0xf] %v450
    %v455 = vlaneseq
    %v456 = vshrl.u32 %v455, 7
    %s457 = sld [smem:[#allocation3]]
    %s458 = sld [smem:[#allocation6]]
    %s459 = sld [smem:[#allocation8]]
    %s460 = scalar_lea.vmem [#allocation2], %s457
    %v461 = vld [vmem:[%s460] sm:$0x1]
    %s462 = scalar_lea.vmem [#allocation2], %s458
    %v463 = vld [vmem:[%s462] sm:$0x1]
    %v464 = vstv %s459
    %vm465 = vcmp.eq.s32.totalorder %v456, %v464
    %v466 = vsel %vm465, 1, 0
    %v467 = vcvt.s32.f32 %v466
    %v468 = vlaneseq
    %v469 = vshrl.u32 %v468, 7
    %v470 = vsub.s32 0, %v469
    %v471 = vrot.slane %v461, %v470
    %v472 = vmul.f32 %v467, %v471
    %v473 = vadd.f32 %v472, 0.0
    %v474 = vlaneseq
    %v475 = vshrl.u32 %v474, 7
    %v476 = vsub.s32 0, %v475
    %v477 = vrot.slane %v463, %v476
    %v478 = vmul.f32 %v467, %v477
    %v479 = vadd.f32 %v478, 0.0
    %v480 = vadd.f32 %v467, 0.0
    %s481 = sld [smem:[#allocation3 + $0x1]]
    %s482 = sld [smem:[#allocation6 + $0x1]]
    %s483 = sld [smem:[#allocation8 + $0x1]]
    %s484 = scalar_lea.vmem [#allocation2], %s481
    %v485 = vld [vmem:[%s484] sm:$0x1]
    %s486 = scalar_lea.vmem [#allocation2], %s482
    %v487 = vld [vmem:[%s486] sm:$0x1]
    %v488 = vstv %s483
    %vm489 = vcmp.eq.s32.totalorder %v456, %v488
    %v490 = vsel %vm489, 1, 0
    %v491 = vcvt.s32.f32 %v490
    %v492 = vlaneseq
    %v493 = vshrl.u32 %v492, 7
    %v494 = vsub.s32 0, %v493
    %v495 = vrot.slane %v485, %v494
    %v496 = vmul.f32 %v491, %v495
    %v497 = vadd.f32 %v473, %v496
    %v498 = vlaneseq
    %v499 = vshrl.u32 %v498, 7
    %v500 = vsub.s32 0, %v499
    %v501 = vrot.slane %v487, %v500
    %v502 = vmul.f32 %v491, %v501
    %v503 = vadd.f32 %v479, %v502
    %v504 = vadd.f32 %v480, %v491
    %s505 = sld [smem:[#allocation3 + $0x2]]
    %s506 = sld [smem:[#allocation6 + $0x2]]
    %s507 = sld [smem:[#allocation8 + $0x2]]
    %s508 = scalar_lea.vmem [#allocation2], %s505
    %v509 = vld [vmem:[%s508] sm:$0x1]
    %s510 = scalar_lea.vmem [#allocation2], %s506
    %v511 = vld [vmem:[%s510] sm:$0x1]
    %v512 = vstv %s507
    %vm513 = vcmp.eq.s32.totalorder %v456, %v512
    %v514 = vsel %vm513, 1, 0
    %v515 = vcvt.s32.f32 %v514
    %v516 = vlaneseq
    %v517 = vshrl.u32 %v516, 7
    %v518 = vsub.s32 0, %v517
    %v519 = vrot.slane %v509, %v518
    %v520 = vmul.f32 %v515, %v519
    %v521 = vadd.f32 %v497, %v520
    %v522 = vlaneseq
    %v523 = vshrl.u32 %v522, 7
    %v524 = vsub.s32 0, %v523
    %v525 = vrot.slane %v511, %v524
    %v526 = vmul.f32 %v515, %v525
    %v527 = vadd.f32 %v503, %v526
    %v528 = vadd.f32 %v504, %v515
    %s529 = sld [smem:[#allocation3 + $0x3]]
    %s530 = sld [smem:[#allocation6 + $0x3]]
    %s531 = sld [smem:[#allocation8 + $0x3]]
    %s532 = scalar_lea.vmem [#allocation2], %s529
    %v533 = vld [vmem:[%s532] sm:$0x1]
    %s534 = scalar_lea.vmem [#allocation2], %s530
    %v535 = vld [vmem:[%s534] sm:$0x1]
    %v536 = vstv %s531
    %vm537 = vcmp.eq.s32.totalorder %v456, %v536
    %v538 = vsel %vm537, 1, 0
    %v539 = vcvt.s32.f32 %v538
    %v540 = vlaneseq
    %v541 = vshrl.u32 %v540, 7
    %v542 = vsub.s32 0, %v541
    %v543 = vrot.slane %v533, %v542
    %v544 = vmul.f32 %v539, %v543
    %v545 = vadd.f32 %v521, %v544
    %v546 = vlaneseq
    %v547 = vshrl.u32 %v546, 7
    %v548 = vsub.s32 0, %v547
    %v549 = vrot.slane %v535, %v548
    %v550 = vmul.f32 %v539, %v549
    %v551 = vadd.f32 %v527, %v550
    %v552 = vadd.f32 %v528, %v539
    %s553 = sld [smem:[#allocation3 + $0x4]]
    %s554 = sld [smem:[#allocation6 + $0x4]]
    %s555 = sld [smem:[#allocation8 + $0x4]]
    %s556 = scalar_lea.vmem [#allocation2], %s553
    %v557 = vld [vmem:[%s556] sm:$0x1]
    %s558 = scalar_lea.vmem [#allocation2], %s554
    %v559 = vld [vmem:[%s558] sm:$0x1]
    %v560 = vstv %s555
    %vm561 = vcmp.eq.s32.totalorder %v456, %v560
    %v562 = vsel %vm561, 1, 0
    %v563 = vcvt.s32.f32 %v562
    %v564 = vlaneseq
    %v565 = vshrl.u32 %v564, 7
    %v566 = vsub.s32 0, %v565
    %v567 = vrot.slane %v557, %v566
    %v568 = vmul.f32 %v563, %v567
    %v569 = vadd.f32 %v545, %v568
    %v570 = vlaneseq
    %v571 = vshrl.u32 %v570, 7
    %v572 = vsub.s32 0, %v571
    %v573 = vrot.slane %v559, %v572
    %v574 = vmul.f32 %v563, %v573
    %v575 = vadd.f32 %v551, %v574
    %v576 = vadd.f32 %v552, %v563
    %s577 = sld [smem:[#allocation3 + $0x5]]
    %s578 = sld [smem:[#allocation6 + $0x5]]
    %s579 = sld [smem:[#allocation8 + $0x5]]
    %s580 = scalar_lea.vmem [#allocation2], %s577
    %v581 = vld [vmem:[%s580] sm:$0x1]
    %s582 = scalar_lea.vmem [#allocation2], %s578
    %v583 = vld [vmem:[%s582] sm:$0x1]
    %v584 = vstv %s579
    %vm585 = vcmp.eq.s32.totalorder %v456, %v584
    %v586 = vsel %vm585, 1, 0
    %v587 = vcvt.s32.f32 %v586
    %v588 = vlaneseq
    %v589 = vshrl.u32 %v588, 7
    %v590 = vsub.s32 0, %v589
    %v591 = vrot.slane %v581, %v590
    %v592 = vmul.f32 %v587, %v591
    %v593 = vadd.f32 %v569, %v592
    %v594 = vlaneseq
    %v595 = vshrl.u32 %v594, 7
    %v596 = vsub.s32 0, %v595
    %v597 = vrot.slane %v583, %v596
    %v598 = vmul.f32 %v587, %v597
    %v599 = vadd.f32 %v575, %v598
    %v600 = vadd.f32 %v576, %v587
    %s601 = sld [smem:[#allocation3 + $0x6]]
    %s602 = sld [smem:[#allocation6 + $0x6]]
    %s603 = sld [smem:[#allocation8 + $0x6]]
    %s604 = scalar_lea.vmem [#allocation2], %s601
    %v605 = vld [vmem:[%s604] sm:$0x1]
    %s606 = scalar_lea.vmem [#allocation2], %s602
    %v607 = vld [vmem:[%s606] sm:$0x1]
    %v608 = vstv %s603
    %vm609 = vcmp.eq.s32.totalorder %v456, %v608
    %v610 = vsel %vm609, 1, 0
    %v611 = vcvt.s32.f32 %v610
    %v612 = vlaneseq
    %v613 = vshrl.u32 %v612, 7
    %v614 = vsub.s32 0, %v613
    %v615 = vrot.slane %v605, %v614
    %v616 = vmul.f32 %v611, %v615
    %v617 = vadd.f32 %v593, %v616
    %v618 = vlaneseq
    %v619 = vshrl.u32 %v618, 7
    %v620 = vsub.s32 0, %v619
    %v621 = vrot.slane %v607, %v620
    %v622 = vmul.f32 %v611, %v621
    %v623 = vadd.f32 %v599, %v622
    %v624 = vadd.f32 %v600, %v611
    %s625 = sld [smem:[#allocation3 + $0x7]]
    %s626 = sld [smem:[#allocation6 + $0x7]]
    %s627 = sld [smem:[#allocation8 + $0x7]]
    %s628 = scalar_lea.vmem [#allocation2], %s625
    %v629 = vld [vmem:[%s628] sm:$0x1]
    %s630 = scalar_lea.vmem [#allocation2], %s626
    %v631 = vld [vmem:[%s630] sm:$0x1]
    %v632 = vstv %s627
    %vm633 = vcmp.eq.s32.totalorder %v456, %v632
    %v634 = vsel %vm633, 1, 0
    %v635 = vcvt.s32.f32 %v634
    %v636 = vlaneseq
    %v637 = vshrl.u32 %v636, 7
    %v638 = vsub.s32 0, %v637
    %v639 = vrot.slane %v629, %v638
    %v640 = vmul.f32 %v635, %v639
    %v641 = vadd.f32 %v617, %v640
    %v642 = vlaneseq
    %v643 = vshrl.u32 %v642, 7
    %v644 = vsub.s32 0, %v643
    %v645 = vrot.slane %v631, %v644
    %v646 = vmul.f32 %v635, %v645
    %v647 = vadd.f32 %v623, %v646
    %v648 = vadd.f32 %v624, %v635
    %s649 = sld [smem:[#allocation3 + $0x8]]
    %s650 = sld [smem:[#allocation6 + $0x8]]
    %s651 = sld [smem:[#allocation8 + $0x8]]
    %s652 = scalar_lea.vmem [#allocation2], %s649
    %v653 = vld [vmem:[%s652] sm:$0x1]
    %s654 = scalar_lea.vmem [#allocation2], %s650
    %v655 = vld [vmem:[%s654] sm:$0x1]
    %v656 = vstv %s651
    %vm657 = vcmp.eq.s32.totalorder %v456, %v656
    %v658 = vsel %vm657, 1, 0
    %v659 = vcvt.s32.f32 %v658
    %v660 = vlaneseq
    %v661 = vshrl.u32 %v660, 7
    %v662 = vsub.s32 0, %v661
    %v663 = vrot.slane %v653, %v662
    %v664 = vmul.f32 %v659, %v663
    %v665 = vadd.f32 %v641, %v664
    %v666 = vlaneseq
    %v667 = vshrl.u32 %v666, 7
    %v668 = vsub.s32 0, %v667
    %v669 = vrot.slane %v655, %v668
    %v670 = vmul.f32 %v659, %v669
    %v671 = vadd.f32 %v647, %v670
    %v672 = vadd.f32 %v648, %v659
    %s673 = sld [smem:[#allocation3 + $0x9]]
    %s674 = sld [smem:[#allocation6 + $0x9]]
    %s675 = sld [smem:[#allocation8 + $0x9]]
    %s676 = scalar_lea.vmem [#allocation2], %s673
    %v677 = vld [vmem:[%s676] sm:$0x1]
    %s678 = scalar_lea.vmem [#allocation2], %s674
    %v679 = vld [vmem:[%s678] sm:$0x1]
    %v680 = vstv %s675
    %vm681 = vcmp.eq.s32.totalorder %v456, %v680
    %v682 = vsel %vm681, 1, 0
    %v683 = vcvt.s32.f32 %v682
    %v684 = vlaneseq
    %v685 = vshrl.u32 %v684, 7
    %v686 = vsub.s32 0, %v685
    %v687 = vrot.slane %v677, %v686
    %v688 = vmul.f32 %v683, %v687
    %v689 = vadd.f32 %v665, %v688
    %v690 = vlaneseq
    %v691 = vshrl.u32 %v690, 7
    %v692 = vsub.s32 0, %v691
    %v693 = vrot.slane %v679, %v692
    %v694 = vmul.f32 %v683, %v693
    %v695 = vadd.f32 %v671, %v694
    %v696 = vadd.f32 %v672, %v683
    %s697 = sld [smem:[#allocation3 + $0xa]]
    %s698 = sld [smem:[#allocation6 + $0xa]]
    %s699 = sld [smem:[#allocation8 + $0xa]]
    %s700 = scalar_lea.vmem [#allocation2], %s697
    %v701 = vld [vmem:[%s700] sm:$0x1]
    %s702 = scalar_lea.vmem [#allocation2], %s698
    %v703 = vld [vmem:[%s702] sm:$0x1]
    %v704 = vstv %s699
    %vm705 = vcmp.eq.s32.totalorder %v456, %v704
    %v706 = vsel %vm705, 1, 0
    %v707 = vcvt.s32.f32 %v706
    %v708 = vlaneseq
    %v709 = vshrl.u32 %v708, 7
    %v710 = vsub.s32 0, %v709
    %v711 = vrot.slane %v701, %v710
    %v712 = vmul.f32 %v707, %v711
    %v713 = vadd.f32 %v689, %v712
    %v714 = vlaneseq
    %v715 = vshrl.u32 %v714, 7
    %v716 = vsub.s32 0, %v715
    %v717 = vrot.slane %v703, %v716
    %v718 = vmul.f32 %v707, %v717
    %v719 = vadd.f32 %v695, %v718
    %v720 = vadd.f32 %v696, %v707
    %s721 = sld [smem:[#allocation3 + $0xb]]
    %s722 = sld [smem:[#allocation6 + $0xb]]
    %s723 = sld [smem:[#allocation8 + $0xb]]
    %s724 = scalar_lea.vmem [#allocation2], %s721
    %v725 = vld [vmem:[%s724] sm:$0x1]
    %s726 = scalar_lea.vmem [#allocation2], %s722
    %v727 = vld [vmem:[%s726] sm:$0x1]
    %v728 = vstv %s723
    %vm729 = vcmp.eq.s32.totalorder %v456, %v728
    %v730 = vsel %vm729, 1, 0
    %v731 = vcvt.s32.f32 %v730
    %v732 = vlaneseq
    %v733 = vshrl.u32 %v732, 7
    %v734 = vsub.s32 0, %v733
    %v735 = vrot.slane %v725, %v734
    %v736 = vmul.f32 %v731, %v735
    %v737 = vadd.f32 %v713, %v736
    %v738 = vlaneseq
    %v739 = vshrl.u32 %v738, 7
    %v740 = vsub.s32 0, %v739
    %v741 = vrot.slane %v727, %v740
    %v742 = vmul.f32 %v731, %v741
    %v743 = vadd.f32 %v719, %v742
    %v744 = vadd.f32 %v720, %v731
    %s745 = sld [smem:[#allocation3 + $0xc]]
    %s746 = sld [smem:[#allocation6 + $0xc]]
    %s747 = sld [smem:[#allocation8 + $0xc]]
    %s748 = scalar_lea.vmem [#allocation2], %s745
    %v749 = vld [vmem:[%s748] sm:$0x1]
    %s750 = scalar_lea.vmem [#allocation2], %s746
    %v751 = vld [vmem:[%s750] sm:$0x1]
    %v752 = vstv %s747
    %vm753 = vcmp.eq.s32.totalorder %v456, %v752
    %v754 = vsel %vm753, 1, 0
    %v755 = vcvt.s32.f32 %v754
    %v756 = vlaneseq
    %v757 = vshrl.u32 %v756, 7
    %v758 = vsub.s32 0, %v757
    %v759 = vrot.slane %v749, %v758
    %v760 = vmul.f32 %v755, %v759
    %v761 = vadd.f32 %v737, %v760
    %v762 = vlaneseq
    %v763 = vshrl.u32 %v762, 7
    %v764 = vsub.s32 0, %v763
    %v765 = vrot.slane %v751, %v764
    %v766 = vmul.f32 %v755, %v765
    %v767 = vadd.f32 %v743, %v766
    %v768 = vadd.f32 %v744, %v755
    %s769 = sld [smem:[#allocation3 + $0xd]]
    %s770 = sld [smem:[#allocation6 + $0xd]]
    %s771 = sld [smem:[#allocation8 + $0xd]]
    %s772 = scalar_lea.vmem [#allocation2], %s769
    %v773 = vld [vmem:[%s772] sm:$0x1]
    %s774 = scalar_lea.vmem [#allocation2], %s770
    %v775 = vld [vmem:[%s774] sm:$0x1]
    %v776 = vstv %s771
    %vm777 = vcmp.eq.s32.totalorder %v456, %v776
    %v778 = vsel %vm777, 1, 0
    %v779 = vcvt.s32.f32 %v778
    %v780 = vlaneseq
    %v781 = vshrl.u32 %v780, 7
    %v782 = vsub.s32 0, %v781
    %v783 = vrot.slane %v773, %v782
    %v784 = vmul.f32 %v779, %v783
    %v785 = vadd.f32 %v761, %v784
    %v786 = vlaneseq
    %v787 = vshrl.u32 %v786, 7
    %v788 = vsub.s32 0, %v787
    %v789 = vrot.slane %v775, %v788
    %v790 = vmul.f32 %v779, %v789
    %v791 = vadd.f32 %v767, %v790
    %v792 = vadd.f32 %v768, %v779
    %s793 = sld [smem:[#allocation3 + $0xe]]
    %s794 = sld [smem:[#allocation6 + $0xe]]
    %s795 = sld [smem:[#allocation8 + $0xe]]
    %s796 = scalar_lea.vmem [#allocation2], %s793
    %v797 = vld [vmem:[%s796] sm:$0x1]
    %s798 = scalar_lea.vmem [#allocation2], %s794
    %v799 = vld [vmem:[%s798] sm:$0x1]
    %v800 = vstv %s795
    %vm801 = vcmp.eq.s32.totalorder %v456, %v800
    %v802 = vsel %vm801, 1, 0
    %v803 = vcvt.s32.f32 %v802
    %v804 = vlaneseq
    %v805 = vshrl.u32 %v804, 7
    %v806 = vsub.s32 0, %v805
    %v807 = vrot.slane %v797, %v806
    %v808 = vmul.f32 %v803, %v807
    %v809 = vadd.f32 %v785, %v808
    %v810 = vlaneseq
    %v811 = vshrl.u32 %v810, 7
    %v812 = vsub.s32 0, %v811
    %v813 = vrot.slane %v799, %v812
    %v814 = vmul.f32 %v803, %v813
    %v815 = vadd.f32 %v791, %v814
    %v816 = vadd.f32 %v792, %v803
    %s817 = sld [smem:[#allocation3 + $0xf]]
    %s818 = sld [smem:[#allocation6 + $0xf]]
    %s819 = sld [smem:[#allocation8 + $0xf]]
    %s820 = scalar_lea.vmem [#allocation2], %s817
    %v821 = vld [vmem:[%s820] sm:$0x1]
    %s822 = scalar_lea.vmem [#allocation2], %s818
    %v823 = vld [vmem:[%s822] sm:$0x1]
    %v824 = vstv %s819
    %vm825 = vcmp.eq.s32.totalorder %v456, %v824
    %v826 = vsel %vm825, 1, 0
    %v827 = vcvt.s32.f32 %v826
    %v828 = vlaneseq
    %v829 = vshrl.u32 %v828, 7
    %v830 = vsub.s32 0, %v829
    %v831 = vrot.slane %v821, %v830
    %v832 = vmul.f32 %v827, %v831
    %v833 = vadd.f32 %v809, %v832
    %v834 = vlaneseq
    %v835 = vshrl.u32 %v834, 7
    %v836 = vsub.s32 0, %v835
    %v837 = vrot.slane %v823, %v836
    %v838 = vmul.f32 %v827, %v837
    %v839 = vadd.f32 %v815, %v838
    %v840 = vadd.f32 %v816, %v827
    %s841 = sld [smem:[#allocation3 + $0x10]]
    %s842 = sld [smem:[#allocation6 + $0x10]]
    %s843 = sld [smem:[#allocation8 + $0x10]]
    %s844 = scalar_lea.vmem [#allocation2], %s841
    %v845 = vld [vmem:[%s844] sm:$0x1]
    %s846 = scalar_lea.vmem [#allocation2], %s842
    %v847 = vld [vmem:[%s846] sm:$0x1]
    %v848 = vstv %s843
    %vm849 = vcmp.eq.s32.totalorder %v456, %v848
    %v850 = vsel %vm849, 1, 0
    %v851 = vcvt.s32.f32 %v850
    %v852 = vlaneseq
    %v853 = vshrl.u32 %v852, 7
    %v854 = vsub.s32 0, %v853
    %v855 = vrot.slane %v845, %v854
    %v856 = vmul.f32 %v851, %v855
    %v857 = vadd.f32 %v833, %v856
    %v858 = vlaneseq
    %v859 = vshrl.u32 %v858, 7
    %v860 = vsub.s32 0, %v859
    %v861 = vrot.slane %v847, %v860
    %v862 = vmul.f32 %v851, %v861
    %v863 = vadd.f32 %v839, %v862
    %v864 = vadd.f32 %v840, %v851
    %s865 = sld [smem:[#allocation3 + $0x11]]
    %s866 = sld [smem:[#allocation6 + $0x11]]
    %s867 = sld [smem:[#allocation8 + $0x11]]
    %s868 = scalar_lea.vmem [#allocation2], %s865
    %v869 = vld [vmem:[%s868] sm:$0x1]
    %s870 = scalar_lea.vmem [#allocation2], %s866
    %v871 = vld [vmem:[%s870] sm:$0x1]
    %v872 = vstv %s867
    %vm873 = vcmp.eq.s32.totalorder %v456, %v872
    %v874 = vsel %vm873, 1, 0
    %v875 = vcvt.s32.f32 %v874
    %v876 = vlaneseq
    %v877 = vshrl.u32 %v876, 7
    %v878 = vsub.s32 0, %v877
    %v879 = vrot.slane %v869, %v878
    %v880 = vmul.f32 %v875, %v879
    %v881 = vadd.f32 %v857, %v880
    %v882 = vlaneseq
    %v883 = vshrl.u32 %v882, 7
    %v884 = vsub.s32 0, %v883
    %v885 = vrot.slane %v871, %v884
    %v886 = vmul.f32 %v875, %v885
    %v887 = vadd.f32 %v863, %v886
    %v888 = vadd.f32 %v864, %v875
    %s889 = sld [smem:[#allocation3 + $0x12]]
    %s890 = sld [smem:[#allocation6 + $0x12]]
    %s891 = sld [smem:[#allocation8 + $0x12]]
    %s892 = scalar_lea.vmem [#allocation2], %s889
    %v893 = vld [vmem:[%s892] sm:$0x1]
    %s894 = scalar_lea.vmem [#allocation2], %s890
    %v895 = vld [vmem:[%s894] sm:$0x1]
    %v896 = vstv %s891
    %vm897 = vcmp.eq.s32.totalorder %v456, %v896
    %v898 = vsel %vm897, 1, 0
    %v899 = vcvt.s32.f32 %v898
    %v900 = vlaneseq
    %v901 = vshrl.u32 %v900, 7
    %v902 = vsub.s32 0, %v901
    %v903 = vrot.slane %v893, %v902
    %v904 = vmul.f32 %v899, %v903
    %v905 = vadd.f32 %v881, %v904
    %v906 = vlaneseq
    %v907 = vshrl.u32 %v906, 7
    %v908 = vsub.s32 0, %v907
    %v909 = vrot.slane %v895, %v908
    %v910 = vmul.f32 %v899, %v909
    %v911 = vadd.f32 %v887, %v910
    %v912 = vadd.f32 %v888, %v899
    %s913 = sld [smem:[#allocation3 + $0x13]]
    %s914 = sld [smem:[#allocation6 + $0x13]]
    %s915 = sld [smem:[#allocation8 + $0x13]]
    %s916 = scalar_lea.vmem [#allocation2], %s913
    %v917 = vld [vmem:[%s916] sm:$0x1]
    %s918 = scalar_lea.vmem [#allocation2], %s914
    %v919 = vld [vmem:[%s918] sm:$0x1]
    %v920 = vstv %s915
    %vm921 = vcmp.eq.s32.totalorder %v456, %v920
    %v922 = vsel %vm921, 1, 0
    %v923 = vcvt.s32.f32 %v922
    %v924 = vlaneseq
    %v925 = vshrl.u32 %v924, 7
    %v926 = vsub.s32 0, %v925
    %v927 = vrot.slane %v917, %v926
    %v928 = vmul.f32 %v923, %v927
    %v929 = vadd.f32 %v905, %v928
    %v930 = vlaneseq
    %v931 = vshrl.u32 %v930, 7
    %v932 = vsub.s32 0, %v931
    %v933 = vrot.slane %v919, %v932
    %v934 = vmul.f32 %v923, %v933
    %v935 = vadd.f32 %v911, %v934
    %v936 = vadd.f32 %v912, %v923
    %v937 = vrcp.pop %v936
    %v938 = vmul.f32 1.0, %v937
    %v939 = vmul.f32 %v929, %v938
    %v940 = vmul.f32 %v935, %v938
    %v941 = vpack.c.bf16 %v939, %v939
    %v942 = vld [vmem:[%s11] sm:$0xf]
    %v943 = vld [vmem:[%s11 + $0x4] sm:$0xf]
    %v944 = vld [vmem:[%s11 + $0x8] sm:$0xf]
    %v945 = vld [vmem:[%s11 + $0xc] sm:$0xf]
    %v946 = vld [vmem:[%s11 + $0x10] sm:$0xf]
    %v947 = vld [vmem:[%s11 + $0x14] sm:$0xf]
    %v948 = vld [vmem:[%s11 + $0x18] sm:$0xf]
    %v949 = vld [vmem:[%s11 + $0x1c] sm:$0xf]
    %v950 = vld [vmem:[%s11 + $0x20] sm:$0xf]
    %v951 = vld [vmem:[%s11 + $0x24] sm:$0xf]
    %v952 = vld [vmem:[%s11 + $0x28] sm:$0xf]
    %v953 = vld [vmem:[%s11 + $0x2c] sm:$0xf]
    %v954 = vld [vmem:[%s11 + $0x30] sm:$0xf]
    %v955 = vld [vmem:[%s11 + $0x34] sm:$0xf]
    %v956 = vld [vmem:[%s11 + $0x38] sm:$0xf]
    %v957 = vld [vmem:[%s11 + $0x3c] sm:$0xf]
    %v958 = vpack.c.bf16 %v940, %v940
    %v959 = vld [vmem:[%s12] sm:$0xf]
    %v960 = vld [vmem:[%s12 + $0x4] sm:$0xf]
    %v961 = vld [vmem:[%s12 + $0x8] sm:$0xf]
    %v962 = vld [vmem:[%s12 + $0xc] sm:$0xf]
    %v963 = vld [vmem:[%s12 + $0x10] sm:$0xf]
    %v964 = vld [vmem:[%s12 + $0x14] sm:$0xf]
    %v965 = vld [vmem:[%s12 + $0x18] sm:$0xf]
    %v966 = vld [vmem:[%s12 + $0x1c] sm:$0xf]
    %v967 = vld [vmem:[%s12 + $0x20] sm:$0xf]
    %v968 = vld [vmem:[%s12 + $0x24] sm:$0xf]
    %v969 = vld [vmem:[%s12 + $0x28] sm:$0xf]
    %v970 = vld [vmem:[%s12 + $0x2c] sm:$0xf]
    %v971 = vld [vmem:[%s12 + $0x30] sm:$0xf]
    %v972 = vld [vmem:[%s12 + $0x34] sm:$0xf]
    %v973 = vld [vmem:[%s12 + $0x38] sm:$0xf]
    %v974 = vld [vmem:[%s12 + $0x3c] sm:$0xf]
    %v991 = vunpack.c.l.b16 %v959
    %v992 = vunpack.c.l.b16 %v960
    %v993 = vunpack.c.l.b16 %v961
    %v994 = vunpack.c.l.b16 %v962
    %v995 = vunpack.c.l.b16 %v963
    %v996 = vunpack.c.l.b16 %v964
    %v997 = vunpack.c.l.b16 %v965
    %v998 = vunpack.c.l.b16 %v966
    %v999 = vunpack.c.l.b16 %v967
    %v1000 = vunpack.c.l.b16 %v968
    %v1001 = vunpack.c.l.b16 %v969
    %v1002 = vunpack.c.l.b16 %v970
    %v1003 = vunpack.c.l.b16 %v971
    %v1004 = vunpack.c.l.b16 %v972
    %v1005 = vunpack.c.l.b16 %v973
    %v1006 = vunpack.c.l.b16 %v974
    %v1007 = vpack.c.b16 %v992, %v991
    %v1008 = vpack.c.b16 %v994, %v993
    %v1009 = vpack.c.b16 %v996, %v995
    %v1010 = vpack.c.b16 %v998, %v997
    %v1011 = vpack.c.b16 %v1000, %v999
    %v1012 = vpack.c.b16 %v1002, %v1001
    %v1013 = vpack.c.b16 %v1004, %v1003
    %v1014 = vpack.c.b16 %v1006, %v1005
    %1023 = vmatprep.subr.bf16.mxu0 0
    %1024 = vmatpush1.bf16.msra.mxu0 %v1007
    %1025 = vmatprep.subr.bf16.mxu0 0
    %1026 = vmatpush1.bf16.msra.mxu0 %v1008
    %1027 = vmatprep.subr.bf16.mxu0 0
    %1028 = vmatpush1.bf16.msra.mxu0 %v1009
    %1029 = vmatprep.subr.bf16.mxu0 0
    %1030 = vmatpush1.bf16.msra.mxu0 %v1010
    %1031 = vmatprep.subr.bf16.mxu0 0
    %1032 = vmatpush1.bf16.msra.mxu0 %v1011
    %1033 = vmatprep.subr.bf16.mxu0 0
    %1034 = vmatpush1.bf16.msra.mxu0 %v1012
    %1035 = vmatprep.subr.bf16.mxu0 0
    %1036 = vmatpush1.bf16.msra.mxu0 %v1013
    %1037 = vmatprep.subr.bf16.mxu0 0
    %1038 = vmatpush1.bf16.msra.mxu0 %v1014
    %1039 = vmatprep.subr.bf16.mxu0 0
    %1040 = vmatpush1.bf16.msra.mxu0 0
    %1041 = vmatprep.subr.bf16.mxu0 0
    %1042 = vmatpush1.bf16.msra.mxu0 0
    %1043 = vmatprep.subr.bf16.mxu0 0
    %1044 = vmatpush1.bf16.msra.mxu0 0
    %1045 = vmatprep.subr.bf16.mxu0 0
    %1046 = vmatpush1.bf16.msra.mxu0 0
    %1047 = vmatprep.subr.bf16.mxu0 0
    %1048 = vmatpush1.bf16.msra.mxu0 0
    %1049 = vmatprep.subr.bf16.mxu0 0
    %1050 = vmatpush1.bf16.msra.mxu0 0
    %1051 = vmatprep.subr.bf16.mxu0 0
    %1052 = vmatpush1.bf16.msra.mxu0 0
    %1053 = vmatprep.subr.bf16.mxu0 0
    %1054 = vmatpush1.bf16.msra.mxu0 0
    %1055 = vmatprep.mubr.bf16.mxu0 0
    %1056 = vmatmul.mubr.bf16.gmra.mrb[0].mxu0 %v958
    %v1057 = vpop.f32.mrb[0].mxu0
    %v1058 = vadd.f32 0.0, %v1057
    %v1059 = vpop.f32.mrb[0].mxu0
    %v1060 = vpop.f32.mrb[0].mxu0
    %v1061 = vpop.f32.mrb[0].mxu0
    %1062 = vdwg.mxu0
    %v1079 = vunpack.c.l.b16 %v942
    %v1080 = vunpack.c.l.b16 %v943
    %v1081 = vunpack.c.l.b16 %v944
    %v1082 = vunpack.c.l.b16 %v945
    %v1083 = vunpack.c.l.b16 %v946
    %v1084 = vunpack.c.l.b16 %v947
    %v1085 = vunpack.c.l.b16 %v948
    %v1086 = vunpack.c.l.b16 %v949
    %v1087 = vunpack.c.l.b16 %v950
    %v1088 = vunpack.c.l.b16 %v951
    %v1089 = vunpack.c.l.b16 %v952
    %v1090 = vunpack.c.l.b16 %v953
    %v1091 = vunpack.c.l.b16 %v954
    %v1092 = vunpack.c.l.b16 %v955
    %v1093 = vunpack.c.l.b16 %v956
    %v1094 = vunpack.c.l.b16 %v957
    %v1095 = vpack.c.b16 %v1080, %v1079
    %v1096 = vpack.c.b16 %v1082, %v1081
    %v1097 = vpack.c.b16 %v1084, %v1083
    %v1098 = vpack.c.b16 %v1086, %v1085
    %v1099 = vpack.c.b16 %v1088, %v1087
    %v1100 = vpack.c.b16 %v1090, %v1089
    %v1101 = vpack.c.b16 %v1092, %v1091
    %v1102 = vpack.c.b16 %v1094, %v1093
    %1111 = vmatprep.subr.bf16.mxu0 0
    %1112 = vmatpush1.bf16.msra.mxu0 %v1095
    %1113 = vmatprep.subr.bf16.mxu0 0
    %1114 = vmatpush1.bf16.msra.mxu0 %v1096
    %1115 = vmatprep.subr.bf16.mxu0 0
    %1116 = vmatpush1.bf16.msra.mxu0 %v1097
    %1117 = vmatprep.subr.bf16.mxu0 0
    %1118 = vmatpush1.bf16.msra.mxu0 %v1098
    %1119 = vmatprep.subr.bf16.mxu0 0
    %1120 = vmatpush1.bf16.msra.mxu0 %v1099
    %1121 = vmatprep.subr.bf16.mxu0 0
    %1122 = vmatpush1.bf16.msra.mxu0 %v1100
    %1123 = vmatprep.subr.bf16.mxu0 0
    %1124 = vmatpush1.bf16.msra.mxu0 %v1101
    %1125 = vmatprep.subr.bf16.mxu0 0
    %1126 = vmatpush1.bf16.msra.mxu0 %v1102
    %1127 = vmatprep.subr.bf16.mxu0 0
    %1128 = vmatpush1.bf16.msra.mxu0 0
    %1129 = vmatprep.subr.bf16.mxu0 0
    %1130 = vmatpush1.bf16.msra.mxu0 0
    %1131 = vmatprep.subr.bf16.mxu0 0
    %1132 = vmatpush1.bf16.msra.mxu0 0
    %1133 = vmatprep.subr.bf16.mxu0 0
    %1134 = vmatpush1.bf16.msra.mxu0 0
    %1135 = vmatprep.subr.bf16.mxu0 0
    %1136 = vmatpush1.bf16.msra.mxu0 0
    %1137 = vmatprep.subr.bf16.mxu0 0
    %1138 = vmatpush1.bf16.msra.mxu0 0
    %1139 = vmatprep.subr.bf16.mxu0 0
    %1140 = vmatpush1.bf16.msra.mxu0 0
    %1141 = vmatprep.subr.bf16.mxu0 0
    %1142 = vmatpush1.bf16.msra.mxu0 0
    %1143 = vmatprep.mubr.bf16.mxu0 0
    %1144 = vmatmul.mubr.bf16.gmra.mrb[0].mxu0 %v941
    %v1145 = vpop.f32.mrb[0].mxu0
    %v1146 = vadd.f32 %v1058, %v1145
    %v1147 = vpop.f32.mrb[0].mxu0
    %v1148 = vpop.f32.mrb[0].mxu0
    %v1149 = vpop.f32.mrb[0].mxu0
    %1150 = vdwg.mxu0
    %v1151 = vld [vmem:[%s13] sm:$0x1]
    %v1153 = vlaneseq
    %v1154 = vshrl.u32 %v1153, 7
    %v1155 = vsub.s32 0, %v1154
    %v1156 = vrot.slane %v1151, %v1155
    %v1158 = vadd.f32 %v1146, %v1156
    %v1159 = vpack.c.bf16 %v1158, %v1158
    %v1160 = vld [vmem:[%s14] sm:$0xf]
    %v1161 = vld [vmem:[%s14 + $0x4] sm:$0xf]
    %v1162 = vld [vmem:[%s14 + $0x8] sm:$0xf]
    %v1163 = vld [vmem:[%s14 + $0xc] sm:$0xf]
    %v1164 = vld [vmem:[%s14 + $0x10] sm:$0xf]
    %v1165 = vld [vmem:[%s14 + $0x14] sm:$0xf]
    %v1166 = vld [vmem:[%s14 + $0x18] sm:$0xf]
    %v1167 = vld [vmem:[%s14 + $0x1c] sm:$0xf]
    %v1168 = vld [vmem:[%s14 + $0x20] sm:$0xf]
    %v1169 = vld [vmem:[%s14 + $0x24] sm:$0xf]
    %v1170 = vld [vmem:[%s14 + $0x28] sm:$0xf]
    %v1171 = vld [vmem:[%s14 + $0x2c] sm:$0xf]
    %v1172 = vld [vmem:[%s14 + $0x30] sm:$0xf]
    %v1173 = vld [vmem:[%s14 + $0x34] sm:$0xf]
    %v1174 = vld [vmem:[%s14 + $0x38] sm:$0xf]
    %v1175 = vld [vmem:[%s14 + $0x3c] sm:$0xf]
    %v1176 = vld [vmem:[%s15] sm:$0x1]
    %v1178 = vlaneseq
    %v1179 = vshrl.u32 %v1178, 7
    %v1180 = vsub.s32 0, %v1179
    %v1181 = vrot.slane %v1176, %v1180
    %v1199 = vunpack.c.l.b16 %v1160
    %v1200 = vunpack.c.l.b16 %v1161
    %v1201 = vunpack.c.l.b16 %v1162
    %v1202 = vunpack.c.l.b16 %v1163
    %v1203 = vunpack.c.l.b16 %v1164
    %v1204 = vunpack.c.l.b16 %v1165
    %v1205 = vunpack.c.l.b16 %v1166
    %v1206 = vunpack.c.l.b16 %v1167
    %v1207 = vunpack.c.l.b16 %v1168
    %v1208 = vunpack.c.l.b16 %v1169
    %v1209 = vunpack.c.l.b16 %v1170
    %v1210 = vunpack.c.l.b16 %v1171
    %v1211 = vunpack.c.l.b16 %v1172
    %v1212 = vunpack.c.l.b16 %v1173
    %v1213 = vunpack.c.l.b16 %v1174
    %v1214 = vunpack.c.l.b16 %v1175
    %v1215 = vpack.c.b16 %v1200, %v1199
    %v1216 = vpack.c.b16 %v1202, %v1201
    %v1217 = vpack.c.b16 %v1204, %v1203
    %v1218 = vpack.c.b16 %v1206, %v1205
    %v1219 = vpack.c.b16 %v1208, %v1207
    %v1220 = vpack.c.b16 %v1210, %v1209
    %v1221 = vpack.c.b16 %v1212, %v1211
    %v1222 = vpack.c.b16 %v1214, %v1213
    %1231 = vmatprep.subr.bf16.mxu0 0
    %1232 = vmatpush1.bf16.msra.mxu0 %v1215
    %1233 = vmatprep.subr.bf16.mxu0 0
    %1234 = vmatpush1.bf16.msra.mxu0 %v1216
    %1235 = vmatprep.subr.bf16.mxu0 0
    %1236 = vmatpush1.bf16.msra.mxu0 %v1217
    %1237 = vmatprep.subr.bf16.mxu0 0
    %1238 = vmatpush1.bf16.msra.mxu0 %v1218
    %1239 = vmatprep.subr.bf16.mxu0 0
    %1240 = vmatpush1.bf16.msra.mxu0 %v1219
    %1241 = vmatprep.subr.bf16.mxu0 0
    %1242 = vmatpush1.bf16.msra.mxu0 %v1220
    %1243 = vmatprep.subr.bf16.mxu0 0
    %1244 = vmatpush1.bf16.msra.mxu0 %v1221
    %1245 = vmatprep.subr.bf16.mxu0 0
    %1246 = vmatpush1.bf16.msra.mxu0 %v1222
    %1247 = vmatprep.subr.bf16.mxu0 0
    %1248 = vmatpush1.bf16.msra.mxu0 0
    %1249 = vmatprep.subr.bf16.mxu0 0
    %1250 = vmatpush1.bf16.msra.mxu0 0
    %1251 = vmatprep.subr.bf16.mxu0 0
    %1252 = vmatpush1.bf16.msra.mxu0 0
    %1253 = vmatprep.subr.bf16.mxu0 0
    %1254 = vmatpush1.bf16.msra.mxu0 0
    %1255 = vmatprep.subr.bf16.mxu0 0
    %1256 = vmatpush1.bf16.msra.mxu0 0
    %1257 = vmatprep.subr.bf16.mxu0 0
    %1258 = vmatpush1.bf16.msra.mxu0 0
    %1259 = vmatprep.subr.bf16.mxu0 0
    %1260 = vmatpush1.bf16.msra.mxu0 0
    %1261 = vmatprep.subr.bf16.mxu0 0
    %1262 = vmatpush1.bf16.msra.mxu0 0
    %1263 = vmatprep.mubr.bf16.mxu0 0
    %1264 = vmatmul.mubr.bf16.gmra.mrb[0].mxu0 %v1159
    %v1265 = vpop.f32.mrb[0].mxu0
    %v1266 = vadd.f32 %v1181, %v1265
    %v1267 = vpop.f32.mrb[0].mxu0
    %v1268 = vpop.f32.mrb[0].mxu0
    %v1269 = vpop.f32.mrb[0].mxu0
    %1270 = vdwg.mxu0
    %v1271 = vld [vmem:[%s9] sm:$0x1f]
    %vm1272 = vcmp.ne.s32.totalorder %v1271, 0
    %v1273 = vld [vmem:[%s10] sm:$0x1f]
    %v1274 = vsel %vm1272, 1, 0
    %1275 = vset.pattern.permute.xlu0 0
    %1276 = vperm.xlu0 %1275, %v1274
    %v1277 = vpop.permute.xlu0 %1276
    %vm1278 = vcmp.eq.s32.totalorder %v1277, 1
    %v1279 = vsel %vm1278, %v1266, %v1273
    %v1280 = vpack.c.bf16 %v1279, %v1279
    %v1281 = vld [vmem:[%s16] sm:$0xf]
    %v1282 = vld [vmem:[%s16 + $0x4] sm:$0xf]
    %v1283 = vld [vmem:[%s16 + $0x8] sm:$0xf]
    %v1284 = vld [vmem:[%s16 + $0xc] sm:$0xf]
    %v1285 = vld [vmem:[%s16 + $0x10] sm:$0xf]
    %v1286 = vld [vmem:[%s16 + $0x14] sm:$0xf]
    %v1287 = vld [vmem:[%s16 + $0x18] sm:$0xf]
    %v1288 = vld [vmem:[%s16 + $0x1c] sm:$0xf]
    %v1289 = vld [vmem:[%s16 + $0x20] sm:$0xf]
    %v1290 = vld [vmem:[%s16 + $0x24] sm:$0xf]
    %v1291 = vld [vmem:[%s16 + $0x28] sm:$0xf]
    %v1292 = vld [vmem:[%s16 + $0x2c] sm:$0xf]
    %v1293 = vld [vmem:[%s16 + $0x30] sm:$0xf]
    %v1294 = vld [vmem:[%s16 + $0x34] sm:$0xf]
    %v1295 = vld [vmem:[%s16 + $0x38] sm:$0xf]
    %v1296 = vld [vmem:[%s16 + $0x3c] sm:$0xf]
    %v1297 = vld [vmem:[%s17] sm:$0x1]
    %v1299 = vlaneseq
    %v1300 = vshrl.u32 %v1299, 7
    %v1301 = vsub.s32 0, %v1300
    %v1302 = vrot.slane %v1297, %v1301
    %v1320 = vunpack.c.l.b16 %v1281
    %v1321 = vunpack.c.l.b16 %v1282
    %v1322 = vunpack.c.l.b16 %v1283
    %v1323 = vunpack.c.l.b16 %v1284
    %v1324 = vunpack.c.l.b16 %v1285
    %v1325 = vunpack.c.l.b16 %v1286
    %v1326 = vunpack.c.l.b16 %v1287
    %v1327 = vunpack.c.l.b16 %v1288
    %v1328 = vunpack.c.l.b16 %v1289
    %v1329 = vunpack.c.l.b16 %v1290
    %v1330 = vunpack.c.l.b16 %v1291
    %v1331 = vunpack.c.l.b16 %v1292
    %v1332 = vunpack.c.l.b16 %v1293
    %v1333 = vunpack.c.l.b16 %v1294
    %v1334 = vunpack.c.l.b16 %v1295
    %v1335 = vunpack.c.l.b16 %v1296
    %v1336 = vpack.c.b16 %v1321, %v1320
    %v1337 = vpack.c.b16 %v1323, %v1322
    %v1338 = vpack.c.b16 %v1325, %v1324
    %v1339 = vpack.c.b16 %v1327, %v1326
    %v1340 = vpack.c.b16 %v1329, %v1328
    %v1341 = vpack.c.b16 %v1331, %v1330
    %v1342 = vpack.c.b16 %v1333, %v1332
    %v1343 = vpack.c.b16 %v1335, %v1334
    %1352 = vmatprep.subr.bf16.mxu0 0
    %1353 = vmatpush1.bf16.msra.mxu0 %v1336
    %1354 = vmatprep.subr.bf16.mxu0 0
    %1355 = vmatpush1.bf16.msra.mxu0 %v1337
    %1356 = vmatprep.subr.bf16.mxu0 0
    %1357 = vmatpush1.bf16.msra.mxu0 %v1338
    %1358 = vmatprep.subr.bf16.mxu0 0
    %1359 = vmatpush1.bf16.msra.mxu0 %v1339
    %1360 = vmatprep.subr.bf16.mxu0 0
    %1361 = vmatpush1.bf16.msra.mxu0 %v1340
    %1362 = vmatprep.subr.bf16.mxu0 0
    %1363 = vmatpush1.bf16.msra.mxu0 %v1341
    %1364 = vmatprep.subr.bf16.mxu0 0
    %1365 = vmatpush1.bf16.msra.mxu0 %v1342
    %1366 = vmatprep.subr.bf16.mxu0 0
    %1367 = vmatpush1.bf16.msra.mxu0 %v1343
    %1368 = vmatprep.subr.bf16.mxu0 0
    %1369 = vmatpush1.bf16.msra.mxu0 0
    %1370 = vmatprep.subr.bf16.mxu0 0
    %1371 = vmatpush1.bf16.msra.mxu0 0
    %1372 = vmatprep.subr.bf16.mxu0 0
    %1373 = vmatpush1.bf16.msra.mxu0 0
    %1374 = vmatprep.subr.bf16.mxu0 0
    %1375 = vmatpush1.bf16.msra.mxu0 0
    %1376 = vmatprep.subr.bf16.mxu0 0
    %1377 = vmatpush1.bf16.msra.mxu0 0
    %1378 = vmatprep.subr.bf16.mxu0 0
    %1379 = vmatpush1.bf16.msra.mxu0 0
    %1380 = vmatprep.subr.bf16.mxu0 0
    %1381 = vmatpush1.bf16.msra.mxu0 0
    %1382 = vmatprep.subr.bf16.mxu0 0
    %1383 = vmatpush1.bf16.msra.mxu0 0
    %1384 = vmatprep.mubr.bf16.mxu0 0
    %1385 = vmatmul.mubr.bf16.gmra.mrb[0].mxu0 %v1280
    %v1386 = vpop.f32.mrb[0].mxu0
    %v1387 = vadd.f32 %v1302, %v1386
    %v1388 = vpop.f32.mrb[0].mxu0
    %v1389 = vpop.f32.mrb[0].mxu0
    %v1390 = vpop.f32.mrb[0].mxu0
    %1391 = vdwg.mxu0
    %v1392 = vld [vmem:[%s18] sm:$0x7]
    %v1393 = vld [vmem:[%s19] sm:$0xf]
    %v1394 = vld [vmem:[%s19 + $0x4] sm:$0xf]
    %v1395 = vld [vmem:[%s19 + $0x8] sm:$0xf]
    %v1396 = vld [vmem:[%s19 + $0xc] sm:$0xf]
    %v1397 = vld [vmem:[%s19 + $0x10] sm:$0xf]
    %v1398 = vld [vmem:[%s19 + $0x14] sm:$0xf]
    %v1399 = vld [vmem:[%s19 + $0x18] sm:$0xf]
    %v1400 = vld [vmem:[%s19 + $0x1c] sm:$0xf]
    %v1401 = vld [vmem:[%s19 + $0x20] sm:$0xf]
    %v1402 = vld [vmem:[%s19 + $0x24] sm:$0xf]
    %v1403 = vld [vmem:[%s19 + $0x28] sm:$0xf]
    %v1404 = vld [vmem:[%s19 + $0x2c] sm:$0xf]
    %v1405 = vld [vmem:[%s19 + $0x30] sm:$0xf]
    %v1406 = vld [vmem:[%s19 + $0x34] sm:$0xf]
    %v1407 = vld [vmem:[%s19 + $0x38] sm:$0xf]
    %v1408 = vld [vmem:[%s19 + $0x3c] sm:$0xf]
    %v1409 = vld [vmem:[%s20] sm:$0x1]
    %v1411 = vlaneseq
    %v1412 = vshrl.u32 %v1411, 7
    %v1413 = vsub.s32 0, %v1412
    %v1414 = vrot.slane %v1409, %v1413
    %v1432 = vunpack.c.l.b16 %v1393
    %v1433 = vunpack.c.l.b16 %v1394
    %v1434 = vunpack.c.l.b16 %v1395
    %v1435 = vunpack.c.l.b16 %v1396
    %v1436 = vunpack.c.l.b16 %v1397
    %v1437 = vunpack.c.l.b16 %v1398
    %v1438 = vunpack.c.l.b16 %v1399
    %v1439 = vunpack.c.l.b16 %v1400
    %v1440 = vunpack.c.l.b16 %v1401
    %v1441 = vunpack.c.l.b16 %v1402
    %v1442 = vunpack.c.l.b16 %v1403
    %v1443 = vunpack.c.l.b16 %v1404
    %v1444 = vunpack.c.l.b16 %v1405
    %v1445 = vunpack.c.l.b16 %v1406
    %v1446 = vunpack.c.l.b16 %v1407
    %v1447 = vunpack.c.l.b16 %v1408
    %v1448 = vpack.c.b16 %v1433, %v1432
    %v1449 = vpack.c.b16 %v1435, %v1434
    %v1450 = vpack.c.b16 %v1437, %v1436
    %v1451 = vpack.c.b16 %v1439, %v1438
    %v1452 = vpack.c.b16 %v1441, %v1440
    %v1453 = vpack.c.b16 %v1443, %v1442
    %v1454 = vpack.c.b16 %v1445, %v1444
    %v1455 = vpack.c.b16 %v1447, %v1446
    %1464 = vmatprep.subr.bf16.mxu0 0
    %1465 = vmatpush1.bf16.msra.mxu0 %v1448
    %1466 = vmatprep.subr.bf16.mxu0 0
    %1467 = vmatpush1.bf16.msra.mxu0 %v1449
    %1468 = vmatprep.subr.bf16.mxu0 0
    %1469 = vmatpush1.bf16.msra.mxu0 %v1450
    %1470 = vmatprep.subr.bf16.mxu0 0
    %1471 = vmatpush1.bf16.msra.mxu0 %v1451
    %1472 = vmatprep.subr.bf16.mxu0 0
    %1473 = vmatpush1.bf16.msra.mxu0 %v1452
    %1474 = vmatprep.subr.bf16.mxu0 0
    %1475 = vmatpush1.bf16.msra.mxu0 %v1453
    %1476 = vmatprep.subr.bf16.mxu0 0
    %1477 = vmatpush1.bf16.msra.mxu0 %v1454
    %1478 = vmatprep.subr.bf16.mxu0 0
    %1479 = vmatpush1.bf16.msra.mxu0 %v1455
    %1480 = vmatprep.subr.bf16.mxu0 0
    %1481 = vmatpush1.bf16.msra.mxu0 0
    %1482 = vmatprep.subr.bf16.mxu0 0
    %1483 = vmatpush1.bf16.msra.mxu0 0
    %1484 = vmatprep.subr.bf16.mxu0 0
    %1485 = vmatpush1.bf16.msra.mxu0 0
    %1486 = vmatprep.subr.bf16.mxu0 0
    %1487 = vmatpush1.bf16.msra.mxu0 0
    %1488 = vmatprep.subr.bf16.mxu0 0
    %1489 = vmatpush1.bf16.msra.mxu0 0
    %1490 = vmatprep.subr.bf16.mxu0 0
    %1491 = vmatpush1.bf16.msra.mxu0 0
    %1492 = vmatprep.subr.bf16.mxu0 0
    %1493 = vmatpush1.bf16.msra.mxu0 0
    %1494 = vmatprep.subr.bf16.mxu0 0
    %1495 = vmatpush1.bf16.msra.mxu0 0
    %1496 = vmatprep.mubr.bf16.mxu0 0
    %1497 = vmatmul.mubr.bf16.gmra.mrb[0].mxu0 %v1392
    %v1498 = vpop.f32.mrb[0].mxu0
    %v1499 = vadd.f32 %v1414, %v1498
    %v1500 = vpop.f32.mrb[0].mxu0
    %v1501 = vpop.f32.mrb[0].mxu0
    %v1502 = vpop.f32.mrb[0].mxu0
    %1503 = vdwg.mxu0
    %v1504 = vpack.c.bf16 %v1499, %v1499
    %v1505 = vld [vmem:[%s21] sm:$0xf]
    %v1506 = vld [vmem:[%s21 + $0x4] sm:$0xf]
    %v1507 = vld [vmem:[%s21 + $0x8] sm:$0xf]
    %v1508 = vld [vmem:[%s21 + $0xc] sm:$0xf]
    %v1509 = vld [vmem:[%s21 + $0x10] sm:$0xf]
    %v1510 = vld [vmem:[%s21 + $0x14] sm:$0xf]
    %v1511 = vld [vmem:[%s21 + $0x18] sm:$0xf]
    %v1512 = vld [vmem:[%s21 + $0x1c] sm:$0xf]
    %v1513 = vld [vmem:[%s21 + $0x20] sm:$0xf]
    %v1514 = vld [vmem:[%s21 + $0x24] sm:$0xf]
    %v1515 = vld [vmem:[%s21 + $0x28] sm:$0xf]
    %v1516 = vld [vmem:[%s21 + $0x2c] sm:$0xf]
    %v1517 = vld [vmem:[%s21 + $0x30] sm:$0xf]
    %v1518 = vld [vmem:[%s21 + $0x34] sm:$0xf]
    %v1519 = vld [vmem:[%s21 + $0x38] sm:$0xf]
    %v1520 = vld [vmem:[%s21 + $0x3c] sm:$0xf]
    %v1521 = vld [vmem:[%s22] sm:$0x1]
    %v1523 = vlaneseq
    %v1524 = vshrl.u32 %v1523, 7
    %v1525 = vsub.s32 0, %v1524
    %v1526 = vrot.slane %v1521, %v1525
    %v1544 = vunpack.c.l.b16 %v1505
    %v1545 = vunpack.c.l.b16 %v1506
    %v1546 = vunpack.c.l.b16 %v1507
    %v1547 = vunpack.c.l.b16 %v1508
    %v1548 = vunpack.c.l.b16 %v1509
    %v1549 = vunpack.c.l.b16 %v1510
    %v1550 = vunpack.c.l.b16 %v1511
    %v1551 = vunpack.c.l.b16 %v1512
    %v1552 = vunpack.c.l.b16 %v1513
    %v1553 = vunpack.c.l.b16 %v1514
    %v1554 = vunpack.c.l.b16 %v1515
    %v1555 = vunpack.c.l.b16 %v1516
    %v1556 = vunpack.c.l.b16 %v1517
    %v1557 = vunpack.c.l.b16 %v1518
    %v1558 = vunpack.c.l.b16 %v1519
    %v1559 = vunpack.c.l.b16 %v1520
    %v1560 = vpack.c.b16 %v1545, %v1544
    %v1561 = vpack.c.b16 %v1547, %v1546
    %v1562 = vpack.c.b16 %v1549, %v1548
    %v1563 = vpack.c.b16 %v1551, %v1550
    %v1564 = vpack.c.b16 %v1553, %v1552
    %v1565 = vpack.c.b16 %v1555, %v1554
    %v1566 = vpack.c.b16 %v1557, %v1556
    %v1567 = vpack.c.b16 %v1559, %v1558
    %1576 = vmatprep.subr.bf16.mxu0 0
    %1577 = vmatpush1.bf16.msra.mxu0 %v1560
    %1578 = vmatprep.subr.bf16.mxu0 0
    %1579 = vmatpush1.bf16.msra.mxu0 %v1561
    %1580 = vmatprep.subr.bf16.mxu0 0
    %1581 = vmatpush1.bf16.msra.mxu0 %v1562
    %1582 = vmatprep.subr.bf16.mxu0 0
    %1583 = vmatpush1.bf16.msra.mxu0 %v1563
    %1584 = vmatprep.subr.bf16.mxu0 0
    %1585 = vmatpush1.bf16.msra.mxu0 %v1564
    %1586 = vmatprep.subr.bf16.mxu0 0
    %1587 = vmatpush1.bf16.msra.mxu0 %v1565
    %1588 = vmatprep.subr.bf16.mxu0 0
    %1589 = vmatpush1.bf16.msra.mxu0 %v1566
    %1590 = vmatprep.subr.bf16.mxu0 0
    %1591 = vmatpush1.bf16.msra.mxu0 %v1567
    %1592 = vmatprep.subr.bf16.mxu0 0
    %1593 = vmatpush1.bf16.msra.mxu0 0
    %1594 = vmatprep.subr.bf16.mxu0 0
    %1595 = vmatpush1.bf16.msra.mxu0 0
    %1596 = vmatprep.subr.bf16.mxu0 0
    %1597 = vmatpush1.bf16.msra.mxu0 0
    %1598 = vmatprep.subr.bf16.mxu0 0
    %1599 = vmatpush1.bf16.msra.mxu0 0
    %1600 = vmatprep.subr.bf16.mxu0 0
    %1601 = vmatpush1.bf16.msra.mxu0 0
    %1602 = vmatprep.subr.bf16.mxu0 0
    %1603 = vmatpush1.bf16.msra.mxu0 0
    %1604 = vmatprep.subr.bf16.mxu0 0
    %1605 = vmatpush1.bf16.msra.mxu0 0
    %1606 = vmatprep.subr.bf16.mxu0 0
    %1607 = vmatpush1.bf16.msra.mxu0 0
    %1608 = vmatprep.mubr.bf16.mxu0 0
    %1609 = vmatmul.mubr.bf16.gmra.mrb[0].mxu0 %v1504
    %v1610 = vpop.f32.mrb[0].mxu0
    %v1611 = vadd.f32 %v1526, %v1610
    %v1612 = vpop.f32.mrb[0].mxu0
    %v1613 = vpop.f32.mrb[0].mxu0
    %v1614 = vpop.f32.mrb[0].mxu0
    %1615 = vdwg.mxu0
    %v1616 = vmul.f32 %v447, %v447
    %v1617 = vmul.f32 %v450, %v450
    %1618 = vadd.xlane.f32.xlu0 %v1616
    %v1619 = vpop.xlane.xlu0 %1618
    %vm1620 = vcmask 1043456
    %v1621 = vsel %vm1620, %v1617, 0.0
    %1622 = vadd.xlane.f32.xlu0 %v1621
    %v1623 = vpop.xlane.xlu0 %1622
    %v1624 = vmax.f32 %v1619, 1e-24
    %v1625 = vmax.f32 %v1623, 1e-24
    %v1626 = vrsqrt.pop %v1624
    %v1627 = vrsqrt.pop %v1625
    %v1628 = vmul.f32 %v447, %v1626
    %v1629 = vmul.f32 %v450, %v1627
    %1630 = vst [vmem:[#allocation9] sm:$0xff] %v1628
    %1631 = vst [vmem:[#allocation9 + $0x8] sm:$0xf] %v1629
    %v1632 = vmul.f32 %v1387, %v1387
    %vm1633 = vcmask 1044480
    %v1634 = vsel %vm1633, %v1632, 0.0
    %1635 = vadd.xlane.f32.xlu0 %v1634
    %v1636 = vpop.xlane.xlu0 %1635
    %v1637 = vmax.f32 %v1636, 1e-24
    %v1638 = vrsqrt.pop %v1637
    %v1639 = vmul.f32 %v1387, %v1638
    %1640 = vst [vmem:[%s24] sm:$0x1f] %v1639
    %v1641 = vmul.f32 %v1611, %v1611
    %v1642 = vsel %vm248, %v1641, 0.0
    %1643 = vadd.xlane.f32.xlu0 %v1642
    %v1644 = vpop.xlane.xlu0 %1643
    %v1645 = vmax.f32 %v1644, 1e-24
    %v1646 = vrsqrt.pop %v1645
    %v1647 = vmul.f32 %v1611, %v1646
    %1648 = vst [vmem:[#allocation10] sm:$0x3f] %v1647
    // Predicated region
    $region106: #{gcn_forward.1} parent=1 // pred_check
      _
    $region107: #{gcn_forward.1} parent=1 // pred_check_branch
      %1650 = sbr.rel (0) target = $region109
    $region108: #{gcn_forward.1} parent=1 // pred_region
      %s1652 = ssub.s32 256, 256
      %1653 = vsyncadd [#allocation4], %s1652
      %s1654 = sshll.u32 [#allocation9], 4
      %s1655 = int_to_ptr.vmem [resolvable:$true] %s1654
      %1660 = dma.vmem_to_hbm [thread:$0]  %s1655, 256, %s23, [#allocation4], 128, 128, 8
    $region109: #{gcn_forward.1} parent=1 // pred_fallthru
      _
    // Predicated region
    $region110: #{gcn_forward.1} parent=1 // pred_check
      _
    $region111: #{gcn_forward.1} parent=1 // pred_check_branch
      %1662 = sbr.rel (0) target = $region113
    $region112: #{gcn_forward.1} parent=1 // pred_region
      _
    $region113: #{gcn_forward.1} parent=1 // pred_fallthru
      _
    // Predicated region
    $region114: #{gcn_forward.1} parent=1 // pred_check
      _
    $region115: #{gcn_forward.1} parent=1 // pred_check_branch
      %1664 = sbr.rel (0) target = $region117
    $region116: #{gcn_forward.1} parent=1 // pred_region
      %s1666 = ssub.s32 128, 128
      %1667 = vsyncadd [#allocation11], %s1666
      %s1669 = sshll.u32 [#allocation10], 4
      %s1670 = int_to_ptr.vmem [resolvable:$true] %s1669
      %1672 = dma.vmem_to_hbm [thread:$0]  %s1670, 128, %s25, [#allocation11]
    $region117: #{gcn_forward.1} parent=1 // pred_fallthru
      _
    // Predicated region
    $region118: #{gcn_forward.1} parent=1 // pred_check
      _
    $region119: #{gcn_forward.1} parent=1 // pred_check_branch
      %1674 = sbr.rel (0) target = $region121
    $region120: #{gcn_forward.1} parent=1 // pred_region
      %1675 = dma.done [#allocation4], 256
    $region121: #{gcn_forward.1} parent=1 // pred_fallthru
      _
    // Predicated region
    $region122: #{gcn_forward.1} parent=1 // pred_check
      _
    $region123: #{gcn_forward.1} parent=1 // pred_check_branch
      %1677 = sbr.rel (0) target = $region125
    $region124: #{gcn_forward.1} parent=1 // pred_region
      _
    $region125: #{gcn_forward.1} parent=1 // pred_fallthru
      _
    // Predicated region
    $region126: #{gcn_forward.1} parent=1 // pred_check
      _
    $region127: #{gcn_forward.1} parent=1 // pred_check_branch
      %1679 = sbr.rel (0) target = $region129
    $region128: #{gcn_forward.1} parent=1 // pred_region
      %1680 = dma.done [#allocation11], 128
    $region129: #{gcn_forward.1} parent=1 // pred_fallthru
      _
    %1681 = vsyncpa [#allocation4], 1
    %1682 = vsyncpa [#allocation11], 1
    %1683 = vsyncpa [#allocation5], 1
    %1684 = vsyncpa [#allocation7], 1

</llo_original>
